<compile_context>
chip_gen: v7x
topology: tpu7x:2x2x1
jax: 0.10.0
libtpu: 0.0.40
codegen_flags: <defaults>
</compile_context>

<pallas_src>
import functools

import numpy as np
import jax
import jax.numpy as jnp
from jax import lax
from jax.experimental import pallas as pl
from jax.experimental.pallas import tpu as pltpu

LEAKY_SLOPE = 0.2
BN_EPS = 1e-5
KW = 4                      # conv kernel size
PADW = 2                    # int(ceil((4 - 1) / 2))
LANES = 128                 # TPU lane width; Cout is padded up to this
TM_MAX = 1024               # rows per tile before falling back to the tiled path
VMEM_LIMIT = 32 * 1024 * 1024   # generation-safe scoped-VMEM budget (v5e/v6e/v7x)

_FUSED_PARAMS = pltpu.CompilerParams(vmem_limit_bytes=VMEM_LIMIT)
_TILED_PARAMS = pltpu.CompilerParams(
    dimension_semantics=("parallel",),       # shards M tiles across v7x's 2 TCs
    vmem_limit_bytes=VMEM_LIMIT,
)


def _round_up(x, m):
    return ((x + m - 1) // m) * m


# ----------------------------------------------------------------------------
# Pallas kernels
# ----------------------------------------------------------------------------
def _conv_bias_act_kernel(x_ref, w_ref, b_ref, o_ref, *, use_act):
    """Fused (patches @ W) + bias [+ LeakyReLU] for layers WITHOUT BatchNorm."""
    y = jnp.dot(x_ref[...], w_ref[...], preferred_element_type=jnp.float32)
    y = y + b_ref[...]                                   # [1, Cp] broadcast
    if use_act:
        y = jnp.maximum(y, LEAKY_SLOPE * y)              # LeakyReLU(0.2): mul+max
    o_ref[...] = y.astype(o_ref.dtype)


def _conv_bn_act_fused_kernel(x_ref, w_ref, gamma_ref, beta_ref, o_ref, *, m_valid):
    """Single-call BN layer: conv + batch stats + scale/shift + LeakyReLU.

    Conv bias omitted (cancels against the batch mean).  Zero-padded patch rows
    contribute exactly 0 to both sums, so dividing by the true row count
    `m_valid` gives the correct batch statistics; padded rows are sliced away
    by the caller.  Everything stays in VMEM - no f32 HBM round-trip.
    """
    y = jnp.dot(x_ref[...], w_ref[...], preferred_element_type=jnp.float32)
    inv_m = 1.0 / m_valid
    s1 = jnp.sum(y, axis=0, keepdims=True)               # [1, Cp]
    s2 = jnp.sum(y * y, axis=0, keepdims=True)           # [1, Cp]
    mean = s1 * inv_m
    var = jnp.maximum(s2 * inv_m - mean * mean, 0.0)     # clamp: no negative var
    scale = gamma_ref[...] * lax.rsqrt(var + BN_EPS)     # EUP rsqrt, [1, Cp]
    shift = beta_ref[...] - mean * scale
    z = y * scale + shift
    o_ref[...] = jnp.maximum(z, LEAKY_SLOPE * z).astype(o_ref.dtype)


def _conv_stats_kernel(x_ref, w_ref, y_ref, s1_ref, s2_ref):
    """Tiled BN pass 1: bf16 conv tile + f32 per-tile sum / sum-of-squares."""
    y = jnp.dot(x_ref[...], w_ref[...], preferred_element_type=jnp.float32)
    y_ref[...] = y.astype(y_ref.dtype)                   # bf16: half the writeback
    s1_ref[...] = jnp.sum(y, axis=0, keepdims=True).reshape(s1_ref.shape)
    s2_ref[...] = jnp.sum(y * y, axis=0, keepdims=True).reshape(s2_ref.shape)


def _bn_act_kernel(y_ref, scale_ref, shift_ref, o_ref):
    """Tiled BN pass 2: y * scale + shift, then LeakyReLU(0.2)."""
    y = y_ref[...].astype(jnp.float32) * scale_ref[...] + shift_ref[...]
    o_ref[...] = jnp.maximum(y, LEAKY_SLOPE * y).astype(o_ref.dtype)


# ----------------------------------------------------------------------------
# pallas_call wrappers
# ----------------------------------------------------------------------------
def _gemm_cost(Mp, K, Cp, out_itemsize, extra_flops=0, transcendentals=0):
    return pl.CostEstimate(
        flops=2 * Mp * K * Cp + extra_flops,
        transcendentals=transcendentals,
        bytes_accessed=Mp * K * 2 + K * Cp * 2 + 4 * Cp * 4 + Mp * Cp * out_itemsize,
    )


def conv_bias_act_single(patches, w, b, *, use_act, out_dtype):
    """Single-tile (no grid) conv + bias [+ act]."""
    Mp, K = patches.shape
    Cp = w.shape[1]
    kernel = functools.partial(_conv_bias_act_kernel, use_act=use_act)
    return pl.pallas_call(
        kernel,
        out_shape=jax.ShapeDtypeStruct((Mp, Cp), out_dtype),
        compiler_params=_FUSED_PARAMS,
        cost_estimate=_gemm_cost(Mp, K, Cp, jnp.dtype(out_dtype).itemsize),
    )(patches, w, b)


def conv_bn_act_fused(patches, w, gamma, beta, *, m_valid, out_dtype):
    """Single-tile fused conv + BatchNorm (batch stats) + LeakyReLU."""
    Mp, K = patches.shape
    Cp = w.shape[1]
    kernel = functools.partial(_conv_bn_act_fused_kernel, m_valid=m_valid)
    return pl.pallas_call(
        kernel,
        out_shape=jax.ShapeDtypeStruct((Mp, Cp), out_dtype),
        compiler_params=_FUSED_PARAMS,
        cost_estimate=_gemm_cost(Mp, K, Cp, jnp.dtype(out_dtype).itemsize,
                                 extra_flops=10 * Mp * Cp, transcendentals=Cp),
    )(patches, w, gamma, beta)


def conv_bias_act_tiled(patches, w, b, *, tm, use_act, out_dtype):
    Mp, K = patches.shape
    Cp = w.shape[1]
    nt = Mp // tm
    kernel = functools.partial(_conv_bias_act_kernel, use_act=use_act)
    return pl.pallas_call(
        kernel,
        out_shape=jax.ShapeDtypeStruct((Mp, Cp), out_dtype),
        grid=(nt,),
        in_specs=[
            pl.BlockSpec((tm, K), lambda i: (i, 0)),
            pl.BlockSpec((K, Cp), lambda i: (0, 0)),
            pl.BlockSpec((1, Cp), lambda i: (0, 0)),
        ],
        out_specs=pl.BlockSpec((tm, Cp), lambda i: (i, 0)),
        compiler_params=_TILED_PARAMS,
        cost_estimate=_gemm_cost(Mp, K, Cp, jnp.dtype(out_dtype).itemsize),
    )(patches, w, b)


def conv_stats_tiled(patches, w, *, tm):
    Mp, K = patches.shape
    Cp = w.shape[1]
    nt = Mp // tm
    return pl.pallas_call(
        _conv_stats_kernel,
        out_shape=(
            jax.ShapeDtypeStruct((Mp, Cp), jnp.bfloat16),    # raw conv output (bf16)
            jax.ShapeDtypeStruct((nt, 1, Cp), jnp.float32),  # per-tile sum
            jax.ShapeDtypeStruct((nt, 1, Cp), jnp.float32),  # per-tile sum of squares
        ),
        grid=(nt,),
        in_specs=[
            pl.BlockSpec((tm, K), lambda i: (i, 0)),
            pl.BlockSpec((K, Cp), lambda i: (0, 0)),
        ],
        out_specs=(
            pl.BlockSpec((tm, Cp), lambda i: (i, 0)),
            pl.BlockSpec((1, 1, Cp), lambda i: (i, 0, 0)),
            pl.BlockSpec((1, 1, Cp), lambda i: (i, 0, 0)),
        ),
        compiler_params=_TILED_PARAMS,
        cost_estimate=_gemm_cost(Mp, K, Cp, 2),
    )(patches, w)


def bn_act_tiled(y_raw, scale, shift, *, tm, out_dtype):
    Mp, Cp = y_raw.shape
    nt = Mp // tm
    return pl.pallas_call(
        _bn_act_kernel,
        out_shape=jax.ShapeDtypeStruct((Mp, Cp), out_dtype),
        grid=(nt,),
        in_specs=[
            pl.BlockSpec((tm, Cp), lambda i: (i, 0)),
            pl.BlockSpec((1, Cp), lambda i: (0, 0)),
            pl.BlockSpec((1, Cp), lambda i: (0, 0)),
        ],
        out_specs=pl.BlockSpec((tm, Cp), lambda i: (i, 0)),
        compiler_params=_TILED_PARAMS,
        cost_estimate=pl.CostEstimate(
            flops=4 * Mp * Cp, transcendentals=0,
            bytes_accessed=Mp * Cp * 2 + 2 * Cp * 4
                           + Mp * Cp * jnp.dtype(out_dtype).itemsize),
    )(y_raw, scale, shift)


# ----------------------------------------------------------------------------
# Glue: im2col (NHWC), parameter init / packing, forward pass
# ----------------------------------------------------------------------------
def im2col(x_nhwc, kh, kw, stride, pad):
    """x: [N,H,W,C] -> patches [N*OH*OW, kh*kw*C] (tap order: kh, kw, cin)."""
    N, H, W, C = x_nhwc.shape
    xp = jnp.pad(x_nhwc, ((0, 0), (pad, pad), (pad, pad), (0, 0)))
    OH = (H + 2 * pad - kh) // stride + 1
    OW = (W + 2 * pad - kw) // stride + 1
    cols = []
    for i in range(kh):
        for j in range(kw):
            sl = xp[:, i:i + stride * (OH - 1) + 1:stride,
                       j:j + stride * (OW - 1) + 1:stride, :]
            cols.append(sl)                               # [N, OH, OW, C]
    patches = jnp.concatenate(cols, axis=-1)              # [N, OH, OW, kh*kw*C]
    return patches.reshape(N * OH * OW, kh * kw * C), OH, OW


def layer_specs(input_nc, ndf, n_layers):
    """Replicates the __init__ schedule: (cin, cout, stride, use_bn, use_act)."""
    specs = [(input_nc, ndf, 2, False, True)]
    nf = ndf
    for _ in range(1, n_layers):
        nf_prev, nf = nf, min(nf * 2, 512)
        specs.append((nf_prev, nf, 2, True, True))
    nf_prev, nf = nf, min(nf * 2, 512)
    specs.append((nf_prev, nf, 1, True, True))
    specs.append((nf, 1, 1, False, False))
    return specs


def init_params(key, input_nc, ndf, n_layers):
    params = []
    for (cin, cout, stride, use_bn, use_act) in layer_specs(input_nc, ndf, n_layers):
        key, k_w, k_b, k_g, k_be = jax.random.split(key, 5)
        w_hwio = jax.random.normal(k_w, (KW, KW, cin, cout), jnp.float32) * 0.02
        b = jax.random.normal(k_b, (cout,), jnp.float32) * 0.02
        # Non-trivial BN affine parameters so the scale/shift path is exercised.
        gamma = 1.0 + 0.1 * jax.random.normal(k_g, (cout,), jnp.float32)
        beta = 0.1 * jax.random.normal(k_be, (cout,), jnp.float32)

        # Lane-dense packing: Cout -> Cp (multiple of 128), zero-pad weights.
        # NOTE: padded weight channels MUST stay exactly 0 (and beta pad 0) so
        # the padded BN channels stay 0 and are harmless before being sliced.
        cp = max(LANES, _round_up(cout, LANES))
        pad_c = cp - cout
        w_p = jnp.pad(w_hwio.astype(jnp.bfloat16).reshape(KW * KW * cin, cout),
                      ((0, 0), (0, pad_c)))               # [K, Cp] bf16
        b_p = jnp.pad(b, (0, pad_c)).reshape(1, cp)       # [1, Cp] f32
        gamma_p = jnp.pad(gamma, (0, pad_c), constant_values=1.0).reshape(1, cp)
        beta_p = jnp.pad(beta, (0, pad_c)).reshape(1, cp)

        params.append(dict(
            # reference (PyTorch-layout) parameters
            w_hwio=w_hwio, b=b, gamma=gamma, beta=beta,
            # kernel-packed parameters
            w_p=w_p, b_p=b_p, gamma_p=gamma_p, beta_p=beta_p,
            cout=cout, stride=stride, use_bn=use_bn, use_act=use_act,
        ))
    return params


def discriminator_forward(x_nchw, params, *, tm_max=TM_MAX):
    # NCHW -> NHWC, cast once to bf16 (MXU input policy; reference matches).
    x = jnp.transpose(x_nchw, (0, 2, 3, 1)).astype(jnp.bfloat16)
    N = x.shape[0]
    for layer in params:
        # TODO(synk): move the 4x4 tap expansion into the kernel; this im2col
        # still materializes a 16x-sized patches tensor in HBM.
        patches, OH, OW = im2col(x, KW, KW, layer["stride"], PADW)
        M, K = patches.shape
        cout = layer["cout"]
        out_dtype = jnp.bfloat16 if layer["use_act"] else jnp.float32

        # Balanced M tiling: <16 rows of zero padding per tile.
        nt = -(-M // tm_max)
        tm = _round_up(-(-M // nt), 16)
        Mp = nt * tm
        if Mp != M:
            patches = jnp.pad(patches, ((0, Mp - M), (0, 0)))

        if nt == 1:
            # Single-tile layer: exactly ONE pallas_call (conv [+BN] [+act]).
            if layer["use_bn"]:
                y = conv_bn_act_fused(patches, layer["w_p"], layer["gamma_p"],
                                      layer["beta_p"], m_valid=M,
                                      out_dtype=out_dtype)
            else:
                y = conv_bias_act_single(patches, layer["w_p"], layer["b_p"],
                                         use_act=layer["use_act"],
                                         out_dtype=out_dtype)
        else:
            # Tiled fallback for large M (megacore-parallel grid axis).
            if layer["use_bn"]:
                y_raw, s1, s2 = conv_stats_tiled(patches, layer["w_p"], tm=tm)
                s1 = jnp.sum(s1, axis=0).reshape(-1)      # tiny [Cp] reductions
                s2 = jnp.sum(s2, axis=0).reshape(-1)
                mean = s1 / M                             # padded rows are exact 0
                var = jnp.maximum(s2 / M - mean * mean, 0.0)
                scale = layer["gamma_p"][0] * lax.rsqrt(var + BN_EPS)
                shift = layer["beta_p"][0] - mean * scale
                y = bn_act_tiled(y_raw, scale.reshape(1, -1), shift.reshape(1, -1),
                                 tm=tm, out_dtype=out_dtype)
            else:
                y = conv_bias_act_tiled(patches, layer["w_p"], layer["b_p"],
                                        tm=tm, use_act=layer["use_act"],
                                        out_dtype=out_dtype)

        # Drop padded rows / padded channels, back to NHWC for the next layer.
        x = y[:M, :cout].reshape(N, OH, OW, cout)
    return jnp.transpose(x, (0, 3, 1, 2)).astype(jnp.float32)   # [N,1,H',W'] f32


# ----------------------------------------------------------------------------
# Pure-JAX reference (lax.conv) with the SAME mixed-precision policy
# (bf16 conv inputs, f32 accumulation / BN / activations) for tight comparison.
# ----------------------------------------------------------------------------
def reference_forward(x_nchw, params):
    x = jnp.transpose(x_nchw, (0, 2, 3, 1)).astype(jnp.float32)
    for layer in params:
        s = layer["stride"]
        y = lax.conv_general_dilated(
            x.astype(jnp.bfloat16), layer["w_hwio"].astype(jnp.bfloat16),
            (s, s), [(PADW, PADW), (PADW, PADW)],
            dimension_numbers=("NHWC", "HWIO", "NHWC"),
            preferred_element_type=jnp.float32)
        y = y + layer["b"].reshape(1, 1, 1, -1)
        if layer["use_bn"]:
            mean = jnp.mean(y, axis=(0, 1, 2), keepdims=True)
            var = jnp.mean((y - mean) ** 2, axis=(0, 1, 2), keepdims=True)
            y = ((y - mean) * lax.rsqrt(var + BN_EPS)
                 * layer["gamma"].reshape(1, 1, 1, -1)
                 + layer["beta"].reshape(1, 1, 1, -1))
        if layer["use_act"]:
            y = jnp.where(y > 0, y, LEAKY_SLOPE * y)
        x = y
    return jnp.transpose(x, (0, 3, 1, 2))


if __name__ == "__main__":
    key = jax.random.PRNGKey(0)
    kx, kp = jax.random.split(key)

    # Small shapes: batch=2, input_nc=4, spatial=16x16, ndf=8, n_layers=3.
    x = jax.random.normal(kx, (2, 4, 16, 16), jnp.float32)   # NCHW (PyTorch-style)
    params = init_params(kp, input_nc=4, ndf=8, n_layers=3)

    ref = jax.block_until_ready(reference_forward(x, params))

    # Optimal path at this config: one fused pallas_call per layer.
    fwd = jax.jit(lambda inp: discriminator_forward(inp, params))
    out = jax.block_until_ready(fwd(x))
    assert out.shape == (2, 1, 5, 5), out.shape
    np.testing.assert_allclose(np.asarray(out, dtype=np.float32),
                               np.asarray(ref, dtype=np.float32),
                               rtol=5e-3, atol=5e-3)

    # Also exercise the tiled (multi-tile, two-pass BN, bf16 y_raw) fallback
    # used for large-M layers; looser tolerance covers the extra bf16 rounding.
    fwd_tiled = jax.jit(lambda inp: discriminator_forward(inp, params, tm_max=16))
    out_t = jax.block_until_ready(fwd_tiled(x))
    np.testing.assert_allclose(np.asarray(out_t, dtype=np.float32),
                               np.asarray(ref, dtype=np.float32),
                               rtol=3e-2, atol=3e-2)

    print("KERNEL_OK")
</pallas_src>

<mosaic_0001>
module attributes {stable_mosaic.version = 11 : i64} {
  func.func @_conv_bias_act_kernel(%arg0: memref<176x64xbf16, #tpu.memory_space<vmem>>, %arg1: memref<64x128xbf16, #tpu.memory_space<vmem>>, %arg2: memref<1x128xf32, #tpu.memory_space<vmem>>, %arg3: memref<176x128xbf16, #tpu.memory_space<vmem>>) attributes {dimension_semantics = [], scalar_prefetch = 0 : i64, scratch_operands = 0 : i64, tpu.core_type = #tpu.core_type<tc>} {
    %c0 = arith.constant 0 : index
    %c0_0 = arith.constant 0 : index
    %0 = vector.load %arg0[%c0, %c0_0] : memref<176x64xbf16, #tpu.memory_space<vmem>>, vector<176x64xbf16>
    %c0_1 = arith.constant 0 : index
    %c0_2 = arith.constant 0 : index
    %1 = vector.load %arg1[%c0_1, %c0_2] : memref<64x128xbf16, #tpu.memory_space<vmem>>, vector<64x128xbf16>
    %cst = arith.constant dense<0.000000e+00> : vector<176x128xf32>
    %2 = tpu.matmul %0, %1, %cst {dimension_numbers = #tpu.dot_dimension_numbers<[1], [0], [0], [1], [0, 0, 1, 1], [], []>} : vector<176x64xbf16>, vector<64x128xbf16>, vector<176x128xf32> -> vector<176x128xf32>
    %c0_3 = arith.constant 0 : index
    %c0_4 = arith.constant 0 : index
    %3 = vector.load %arg2[%c0_3, %c0_4] : memref<1x128xf32, #tpu.memory_space<vmem>>, vector<1x128xf32>
    %4 = vector.broadcast %3 : vector<1x128xf32> to vector<176x128xf32>
    %5 = arith.addf %2, %4 : vector<176x128xf32>
    %cst_5 = arith.constant 2.000000e-01 : f32
    %6 = vector.broadcast %cst_5 : f32 to vector<176x128xf32>
    %7 = arith.mulf %6, %5 : vector<176x128xf32>
    %8 = arith.maximumf %5, %7 : vector<176x128xf32>
    %9 = arith.truncf %8 : vector<176x128xf32> to vector<176x128xbf16>
    %c0_6 = arith.constant 0 : index
    %c0_7 = arith.constant 0 : index
    %10 = vector.load %arg3[%c0_6, %c0_7] : memref<176x128xbf16, #tpu.memory_space<vmem>>, vector<176x128xbf16>
    tpu.vector_store %arg3[%c0_6, %c0_7], %9 {strides = array<i32>} : memref<176x128xbf16, #tpu.memory_space<vmem>>, vector<176x128xbf16>,
    return
  }
}

module attributes {stable_mosaic.version = 11 : i64} {
  func.func @_conv_bn_act_fused_kernel(%arg0: memref<64x128xbf16, #tpu.memory_space<vmem>>, %arg1: memref<128x128xbf16, #tpu.memory_space<vmem>>, %arg2: memref<1x128xf32, #tpu.memory_space<vmem>>, %arg3: memref<1x128xf32, #tpu.memory_space<vmem>>, %arg4: memref<64x128xbf16, #tpu.memory_space<vmem>>) attributes {dimension_semantics = [], scalar_prefetch = 0 : i64, scratch_operands = 0 : i64, tpu.core_type = #tpu.core_type<tc>} {
    %c0 = arith.constant 0 : index
    %c0_0 = arith.constant 0 : index
    %0 = vector.load %arg0[%c0, %c0_0] : memref<64x128xbf16, #tpu.memory_space<vmem>>, vector<64x128xbf16>
    %c0_1 = arith.constant 0 : index
    %c0_2 = arith.constant 0 : index
    %1 = vector.load %arg1[%c0_1, %c0_2] : memref<128x128xbf16, #tpu.memory_space<vmem>>, vector<128x128xbf16>
    %cst = arith.constant dense<0.000000e+00> : vector<64x128xf32>
    %2 = tpu.matmul %0, %1, %cst {dimension_numbers = #tpu.dot_dimension_numbers<[1], [0], [0], [1], [0, 0, 1, 1], [], []>} : vector<64x128xbf16>, vector<128x128xbf16>, vector<64x128xf32> -> vector<64x128xf32>
    %cst_3 = arith.constant dense<0.000000e+00> : vector<128xf32>
    %3 = vector.multi_reduction <add>, %2, %cst_3 [0] : vector<64x128xf32> to vector<128xf32>
    %4 = vector.shape_cast %3 : vector<128xf32> to vector<1x128xf32>
    %5 = arith.mulf %2, %2 : vector<64x128xf32>
    %cst_4 = arith.constant dense<0.000000e+00> : vector<128xf32>
    %6 = vector.multi_reduction <add>, %5, %cst_4 [0] : vector<64x128xf32> to vector<128xf32>
    %7 = vector.shape_cast %6 : vector<128xf32> to vector<1x128xf32>
    %cst_5 = arith.constant 2.000000e-02 : f32
    %8 = vector.broadcast %cst_5 : f32 to vector<1x128xf32>
    %9 = arith.mulf %4, %8 : vector<1x128xf32>
    %cst_6 = arith.constant 2.000000e-02 : f32
    %10 = vector.broadcast %cst_6 : f32 to vector<1x128xf32>
    %11 = arith.mulf %7, %10 : vector<1x128xf32>
    %12 = arith.mulf %9, %9 : vector<1x128xf32>
    %13 = arith.subf %11, %12 : vector<1x128xf32>
    %cst_7 = arith.constant 0.000000e+00 : f32
    %14 = vector.broadcast %cst_7 : f32 to vector<1x128xf32>
    %15 = arith.maximumf %13, %14 : vector<1x128xf32>
    %c0_8 = arith.constant 0 : index
    %c0_9 = arith.constant 0 : index
    %16 = vector.load %arg2[%c0_8, %c0_9] : memref<1x128xf32, #tpu.memory_space<vmem>>, vector<1x128xf32>
    %cst_10 = arith.constant 9.99999974E-6 : f32
    %17 = vector.broadcast %cst_10 : f32 to vector<1x128xf32>
    %18 = arith.addf %15, %17 : vector<1x128xf32>
    %19 = math.rsqrt %18 : vector<1x128xf32>
    %20 = arith.mulf %16, %19 : vector<1x128xf32>
    %c0_11 = arith.constant 0 : index
    %c0_12 = arith.constant 0 : index
    %21 = vector.load %arg3[%c0_11, %c0_12] : memref<1x128xf32, #tpu.memory_space<vmem>>, vector<1x128xf32>
    %22 = arith.mulf %9, %20 : vector<1x128xf32>
    %23 = arith.subf %21, %22 : vector<1x128xf32>
    %24 = vector.broadcast %20 : vector<1x128xf32> to vector<64x128xf32>
    %25 = arith.mulf %2, %24 : vector<64x128xf32>
    %26 = vector.broadcast %23 : vector<1x128xf32> to vector<64x128xf32>
    %27 = arith.addf %25, %26 : vector<64x128xf32>
    %cst_13 = arith.constant 2.000000e-01 : f32
    %28 = vector.broadcast %cst_13 : f32 to vector<64x128xf32>
    %29 = arith.mulf %28, %27 : vector<64x128xf32>
    %30 = arith.maximumf %27, %29 : vector<64x128xf32>
    %31 = arith.truncf %30 : vector<64x128xf32> to vector<64x128xbf16>
    %c0_14 = arith.constant 0 : index
    %c0_15 = arith.constant 0 : index
    %32 = vector.load %arg4[%c0_14, %c0_15] : memref<64x128xbf16, #tpu.memory_space<vmem>>, vector<64x128xbf16>
    tpu.vector_store %arg4[%c0_14, %c0_15], %31 {strides = array<i32>} : memref<64x128xbf16, #tpu.memory_space<vmem>>, vector<64x128xbf16>,
    return
  }
}

module attributes {stable_mosaic.version = 11 : i64} {
  func.func @_conv_bn_act_fused_kernel(%arg0: memref<32x256xbf16, #tpu.memory_space<vmem>>, %arg1: memref<256x128xbf16, #tpu.memory_space<vmem>>, %arg2: memref<1x128xf32, #tpu.memory_space<vmem>>, %arg3: memref<1x128xf32, #tpu.memory_space<vmem>>, %arg4: memref<32x128xbf16, #tpu.memory_space<vmem>>) attributes {dimension_semantics = [], scalar_prefetch = 0 : i64, scratch_operands = 0 : i64, tpu.core_type = #tpu.core_type<tc>} {
    %c0 = arith.constant 0 : index
    %c0_0 = arith.constant 0 : index
    %0 = vector.load %arg0[%c0, %c0_0] : memref<32x256xbf16, #tpu.memory_space<vmem>>, vector<32x256xbf16>
    %c0_1 = arith.constant 0 : index
    %c0_2 = arith.constant 0 : index
    %1 = vector.load %arg1[%c0_1, %c0_2] : memref<256x128xbf16, #tpu.memory_space<vmem>>, vector<256x128xbf16>
    %cst = arith.constant dense<0.000000e+00> : vector<32x128xf32>
    %2 = tpu.matmul %0, %1, %cst {dimension_numbers = #tpu.dot_dimension_numbers<[1], [0], [0], [1], [0, 0, 1, 1], [], []>} : vector<32x256xbf16>, vector<256x128xbf16>, vector<32x128xf32> -> vector<32x128xf32>
    %cst_3 = arith.constant dense<0.000000e+00> : vector<128xf32>
    %3 = vector.multi_reduction <add>, %2, %cst_3 [0] : vector<32x128xf32> to vector<128xf32>
    %4 = vector.shape_cast %3 : vector<128xf32> to vector<1x128xf32>
    %5 = arith.mulf %2, %2 : vector<32x128xf32>
    %cst_4 = arith.constant dense<0.000000e+00> : vector<128xf32>
    %6 = vector.multi_reduction <add>, %5, %cst_4 [0] : vector<32x128xf32> to vector<128xf32>
    %7 = vector.shape_cast %6 : vector<128xf32> to vector<1x128xf32>
    %cst_5 = arith.constant 0.055555556 : f32
    %8 = vector.broadcast %cst_5 : f32 to vector<1x128xf32>
    %9 = arith.mulf %4, %8 : vector<1x128xf32>
    %cst_6 = arith.constant 0.055555556 : f32
    %10 = vector.broadcast %cst_6 : f32 to vector<1x128xf32>
    %11 = arith.mulf %7, %10 : vector<1x128xf32>
    %12 = arith.mulf %9, %9 : vector<1x128xf32>
    %13 = arith.subf %11, %12 : vector<1x128xf32>
    %cst_7 = arith.constant 0.000000e+00 : f32
    %14 = vector.broadcast %cst_7 : f32 to vector<1x128xf32>
    %15 = arith.maximumf %13, %14 : vector<1x128xf32>
    %c0_8 = arith.constant 0 : index
    %c0_9 = arith.constant 0 : index
    %16 = vector.load %arg2[%c0_8, %c0_9] : memref<1x128xf32, #tpu.memory_space<vmem>>, vector<1x128xf32>
    %cst_10 = arith.constant 9.99999974E-6 : f32
    %17 = vector.broadcast %cst_10 : f32 to vector<1x128xf32>
    %18 = arith.addf %15, %17 : vector<1x128xf32>
    %19 = math.rsqrt %18 : vector<1x128xf32>
    %20 = arith.mulf %16, %19 : vector<1x128xf32>
    %c0_11 = arith.constant 0 : index
    %c0_12 = arith.constant 0 : index
    %21 = vector.load %arg3[%c0_11, %c0_12] : memref<1x128xf32, #tpu.memory_space<vmem>>, vector<1x128xf32>
    %22 = arith.mulf %9, %20 : vector<1x128xf32>
    %23 = arith.subf %21, %22 : vector<1x128xf32>
    %24 = vector.broadcast %20 : vector<1x128xf32> to vector<32x128xf32>
    %25 = arith.mulf %2, %24 : vector<32x128xf32>
    %26 = vector.broadcast %23 : vector<1x128xf32> to vector<32x128xf32>
    %27 = arith.addf %25, %26 : vector<32x128xf32>
    %cst_13 = arith.constant 2.000000e-01 : f32
    %28 = vector.broadcast %cst_13 : f32 to vector<32x128xf32>
    %29 = arith.mulf %28, %27 : vector<32x128xf32>
    %30 = arith.maximumf %27, %29 : vector<32x128xf32>
    %31 = arith.truncf %30 : vector<32x128xf32> to vector<32x128xbf16>
    %c0_14 = arith.constant 0 : index
    %c0_15 = arith.constant 0 : index
    %32 = vector.load %arg4[%c0_14, %c0_15] : memref<32x128xbf16, #tpu.memory_space<vmem>>, vector<32x128xbf16>
    tpu.vector_store %arg4[%c0_14, %c0_15], %31 {strides = array<i32>} : memref<32x128xbf16, #tpu.memory_space<vmem>>, vector<32x128xbf16>,
    return
  }
}

module attributes {stable_mosaic.version = 11 : i64} {
  func.func @_conv_bn_act_fused_kernel(%arg0: memref<32x512xbf16, #tpu.memory_space<vmem>>, %arg1: memref<512x128xbf16, #tpu.memory_space<vmem>>, %arg2: memref<1x128xf32, #tpu.memory_space<vmem>>, %arg3: memref<1x128xf32, #tpu.memory_space<vmem>>, %arg4: memref<32x128xbf16, #tpu.memory_space<vmem>>) attributes {dimension_semantics = [], scalar_prefetch = 0 : i64, scratch_operands = 0 : i64, tpu.core_type = #tpu.core_type<tc>} {
    %c0 = arith.constant 0 : index
    %c0_0 = arith.constant 0 : index
    %0 = vector.load %arg0[%c0, %c0_0] : memref<32x512xbf16, #tpu.memory_space<vmem>>, vector<32x512xbf16>
    %c0_1 = arith.constant 0 : index
    %c0_2 = arith.constant 0 : index
    %1 = vector.load %arg1[%c0_1, %c0_2] : memref<512x128xbf16, #tpu.memory_space<vmem>>, vector<512x128xbf16>
    %cst = arith.constant dense<0.000000e+00> : vector<32x128xf32>
    %2 = tpu.matmul %0, %1, %cst {dimension_numbers = #tpu.dot_dimension_numbers<[1], [0], [0], [1], [0, 0, 1, 1], [], []>} : vector<32x512xbf16>, vector<512x128xbf16>, vector<32x128xf32> -> vector<32x128xf32>
    %cst_3 = arith.constant dense<0.000000e+00> : vector<128xf32>
    %3 = vector.multi_reduction <add>, %2, %cst_3 [0] : vector<32x128xf32> to vector<128xf32>
    %4 = vector.shape_cast %3 : vector<128xf32> to vector<1x128xf32>
    %5 = arith.mulf %2, %2 : vector<32x128xf32>
    %cst_4 = arith.constant dense<0.000000e+00> : vector<128xf32>
    %6 = vector.multi_reduction <add>, %5, %cst_4 [0] : vector<32x128xf32> to vector<128xf32>
    %7 = vector.shape_cast %6 : vector<128xf32> to vector<1x128xf32>
    %cst_5 = arith.constant 3.125000e-02 : f32
    %8 = vector.broadcast %cst_5 : f32 to vector<1x128xf32>
    %9 = arith.mulf %4, %8 : vector<1x128xf32>
    %cst_6 = arith.constant 3.125000e-02 : f32
    %10 = vector.broadcast %cst_6 : f32 to vector<1x128xf32>
    %11 = arith.mulf %7, %10 : vector<1x128xf32>
    %12 = arith.mulf %9, %9 : vector<1x128xf32>
    %13 = arith.subf %11, %12 : vector<1x128xf32>
    %cst_7 = arith.constant 0.000000e+00 : f32
    %14 = vector.broadcast %cst_7 : f32 to vector<1x128xf32>
    %15 = arith.maximumf %13, %14 : vector<1x128xf32>
    %c0_8 = arith.constant 0 : index
    %c0_9 = arith.constant 0 : index
    %16 = vector.load %arg2[%c0_8, %c0_9] : memref<1x128xf32, #tpu.memory_space<vmem>>, vector<1x128xf32>
    %cst_10 = arith.constant 9.99999974E-6 : f32
    %17 = vector.broadcast %cst_10 : f32 to vector<1x128xf32>
    %18 = arith.addf %15, %17 : vector<1x128xf32>
    %19 = math.rsqrt %18 : vector<1x128xf32>
    %20 = arith.mulf %16, %19 : vector<1x128xf32>
    %c0_11 = arith.constant 0 : index
    %c0_12 = arith.constant 0 : index
    %21 = vector.load %arg3[%c0_11, %c0_12] : memref<1x128xf32, #tpu.memory_space<vmem>>, vector<1x128xf32>
    %22 = arith.mulf %9, %20 : vector<1x128xf32>
    %23 = arith.subf %21, %22 : vector<1x128xf32>
    %24 = vector.broadcast %20 : vector<1x128xf32> to vector<32x128xf32>
    %25 = arith.mulf %2, %24 : vector<32x128xf32>
    %26 = vector.broadcast %23 : vector<1x128xf32> to vector<32x128xf32>
    %27 = arith.addf %25, %26 : vector<32x128xf32>
    %cst_13 = arith.constant 2.000000e-01 : f32
    %28 = vector.broadcast %cst_13 : f32 to vector<32x128xf32>
    %29 = arith.mulf %28, %27 : vector<32x128xf32>
    %30 = arith.maximumf %27, %29 : vector<32x128xf32>
    %31 = arith.truncf %30 : vector<32x128xf32> to vector<32x128xbf16>
    %c0_14 = arith.constant 0 : index
    %c0_15 = arith.constant 0 : index
    %32 = vector.load %arg4[%c0_14, %c0_15] : memref<32x128xbf16, #tpu.memory_space<vmem>>, vector<32x128xbf16>
    tpu.vector_store %arg4[%c0_14, %c0_15], %31 {strides = array<i32>} : memref<32x128xbf16, #tpu.memory_space<vmem>>, vector<32x128xbf16>,
    return
  }
}

module attributes {stable_mosaic.version = 11 : i64} {
  func.func @_conv_bias_act_kernel(%arg0: memref<64x1024xbf16, #tpu.memory_space<vmem>>, %arg1: memref<1024x128xbf16, #tpu.memory_space<vmem>>, %arg2: memref<1x128xf32, #tpu.memory_space<vmem>>, %arg3: memref<64x128xf32, #tpu.memory_space<vmem>>) attributes {dimension_semantics = [], scalar_prefetch = 0 : i64, scratch_operands = 0 : i64, tpu.core_type = #tpu.core_type<tc>} {
    %c0 = arith.constant 0 : index
    %c0_0 = arith.constant 0 : index
    %0 = vector.load %arg0[%c0, %c0_0] : memref<64x1024xbf16, #tpu.memory_space<vmem>>, vector<64x1024xbf16>
    %c0_1 = arith.constant 0 : index
    %c0_2 = arith.constant 0 : index
    %1 = vector.load %arg1[%c0_1, %c0_2] : memref<1024x128xbf16, #tpu.memory_space<vmem>>, vector<1024x128xbf16>
    %cst = arith.constant dense<0.000000e+00> : vector<64x128xf32>
    %2 = tpu.matmul %0, %1, %cst {dimension_numbers = #tpu.dot_dimension_numbers<[1], [0], [0], [1], [0, 0, 1, 1], [], []>} : vector<64x1024xbf16>, vector<1024x128xbf16>, vector<64x128xf32> -> vector<64x128xf32>
    %c0_3 = arith.constant 0 : index
    %c0_4 = arith.constant 0 : index
    %3 = vector.load %arg2[%c0_3, %c0_4] : memref<1x128xf32, #tpu.memory_space<vmem>>, vector<1x128xf32>
    %4 = vector.broadcast %3 : vector<1x128xf32> to vector<64x128xf32>
    %5 = arith.addf %2, %4 : vector<64x128xf32>
    %c0_5 = arith.constant 0 : index
    %c0_6 = arith.constant 0 : index
    %6 = vector.load %arg3[%c0_5, %c0_6] : memref<64x128xf32, #tpu.memory_space<vmem>>, vector<64x128xf32>
    tpu.vector_store %arg3[%c0_5, %c0_6], %5 {strides = array<i32>} : memref<64x128xf32, #tpu.memory_space<vmem>>, vector<64x128xf32>,
    return
  }
}

</mosaic_0001>

<llo_original>
// kernel: _lambda_.5
$region0: #{_lambda_.5}
  #allocation0 [shape = 'u32[]', space=smem, size = 0x4, offset = 0x4, fixed_abs, tag = 'smem constant byte address 0x4 - core index']
  #allocation1 [shape = 'u32[144,128]{1,0:T(1,128)}', space=vmem, size = 0x12000, scoped, tag = 'internal scratch']
  %s0 = inlined_call_operand.vmem [shape: bf16[176,64], index: 0, kind: input, shape index: {}]
  %s1 = inlined_call_operand.vmem [shape: bf16[64,128], index: 1, kind: input, shape index: {}]
  %s2 = inlined_call_operand.vmem [shape: f32[1,128], index: 2, kind: input, shape index: {}]
  %s3 = inlined_call_operand.vmem [shape: bf16[176,128], index: 3, kind: output, shape index: {}]
  %s4 = sld [smem:[#allocation0]]
  $region22: #{_lambda_.5} parent=0
    _
  %s6 = ssub.s32 1, %s4
  %s7 = scalar_select 0, %s6, %s4
  // Predicated region
  $region2: #{_lambda_.5} parent=0 // pred_check
    _
  $region3: #{_lambda_.5} parent=0 // pred_check_branch
    %9 = sbr.rel (0) target = $region5
  $region4: #{_lambda_.5} parent=0 // pred_region
    _
  $region5: #{_lambda_.5} parent=0 // pred_fallthru
    _
  // Predicated region
  $region6: #{_lambda_.5} parent=0 // pred_check
    _
  $region7: #{_lambda_.5} parent=0 // pred_check_branch
    %11 = sbr.rel (0) target = $region9
  $region8: #{_lambda_.5} parent=0 // pred_region
    _
  $region9: #{_lambda_.5} parent=0 // pred_fallthru
    _
  // Predicated region
  $region10: #{_lambda_.5} parent=0 // pred_check
    _
  $region11: #{_lambda_.5} parent=0 // pred_check_branch
    %13 = sbr.rel (0) target = $region13
  $region12: #{_lambda_.5} parent=0 // pred_region
    _
  $region13: #{_lambda_.5} parent=0 // pred_fallthru
    _
  %v15 = vld [vmem:[%s0] sm:$0xf]
  %v16 = vld [vmem:[%s0 + $0x4] sm:$0xf]
  %v17 = vld [vmem:[%s0 + $0x8] sm:$0xf]
  %v18 = vld [vmem:[%s0 + $0xc] sm:$0xf]
  %v19 = vld [vmem:[%s0 + $0x10] sm:$0xf]
  %v20 = vld [vmem:[%s0 + $0x14] sm:$0xf]
  %v21 = vld [vmem:[%s0 + $0x18] sm:$0xf]
  %v22 = vld [vmem:[%s0 + $0x1c] sm:$0xf]
  %v23 = vld [vmem:[%s0 + $0x20] sm:$0xf]
  %v24 = vld [vmem:[%s0 + $0x24] sm:$0xf]
  %v25 = vld [vmem:[%s0 + $0x28] sm:$0xf]
  %v26 = vld [vmem:[%s0 + $0x2c] sm:$0xf]
  %v27 = vld [vmem:[%s0 + $0x30] sm:$0xf]
  %v28 = vld [vmem:[%s0 + $0x34] sm:$0xf]
  %v29 = vld [vmem:[%s0 + $0x38] sm:$0xf]
  %v30 = vld [vmem:[%s0 + $0x3c] sm:$0xf]
  %v31 = vld [vmem:[%s0 + $0x40] sm:$0xf]
  %v32 = vld [vmem:[%s0 + $0x44] sm:$0xf]
  %v33 = vld [vmem:[%s0 + $0x48] sm:$0xf]
  %v34 = vld [vmem:[%s0 + $0x4c] sm:$0xf]
  %v35 = vld [vmem:[%s0 + $0x50] sm:$0xf]
  %v36 = vld [vmem:[%s0 + $0x54] sm:$0xf]
  %v37 = vld [vmem:[%s1] sm:$0xf]
  %v38 = vld [vmem:[%s1 + $0x4] sm:$0xf]
  %v39 = vld [vmem:[%s1 + $0x8] sm:$0xf]
  %v40 = vld [vmem:[%s1 + $0xc] sm:$0xf]
  %v41 = vld [vmem:[%s1 + $0x10] sm:$0xf]
  %v42 = vld [vmem:[%s1 + $0x14] sm:$0xf]
  %v43 = vld [vmem:[%s1 + $0x18] sm:$0xf]
  %v44 = vld [vmem:[%s1 + $0x1c] sm:$0xf]
  %v45 = vld [vmem:[%s2] sm:$0x1]
  %v47 = vlaneseq
  %v48 = vshrl.u32 %v47, 7
  %v49 = vsub.s32 0, %v48
  %v50 = vrot.slane %v45, %v49
  %v74 = vunpack.c.l.b16 %v15
  %v75 = vunpack.c.l.b16 %v16
  %v76 = vunpack.c.l.b16 %v17
  %v77 = vunpack.c.l.b16 %v18
  %v78 = vunpack.c.l.b16 %v19
  %v79 = vunpack.c.l.b16 %v20
  %v80 = vunpack.c.l.b16 %v21
  %v81 = vunpack.c.l.b16 %v22
  %v82 = vunpack.c.l.b16 %v23
  %v83 = vunpack.c.l.b16 %v24
  %v84 = vunpack.c.l.b16 %v25
  %v85 = vunpack.c.l.b16 %v26
  %v86 = vunpack.c.l.b16 %v27
  %v87 = vunpack.c.l.b16 %v28
  %v88 = vunpack.c.l.b16 %v29
  %v89 = vunpack.c.l.b16 %v30
  %v90 = vunpack.c.l.b16 %v31
  %v91 = vunpack.c.l.b16 %v32
  %v92 = vunpack.c.l.b16 %v33
  %v93 = vunpack.c.l.b16 %v34
  %v94 = vunpack.c.l.b16 %v35
  %v95 = vunpack.c.l.b16 %v36
  %v96 = vpack.c.b16 %v75, %v74
  %v97 = vpack.c.b16 %v77, %v76
  %v98 = vpack.c.b16 %v79, %v78
  %v99 = vpack.c.b16 %v81, %v80
  %v100 = vpack.c.b16 %v83, %v82
  %v101 = vpack.c.b16 %v85, %v84
  %v102 = vpack.c.b16 %v87, %v86
  %v103 = vpack.c.b16 %v89, %v88
  %v104 = vpack.c.b16 %v91, %v90
  %v105 = vpack.c.b16 %v93, %v92
  %v106 = vpack.c.b16 %v95, %v94
  %v115 = vunpack.c.l.b16 %v37
  %v116 = vunpack.c.l.b16 %v38
  %v117 = vunpack.c.l.b16 %v39
  %v118 = vunpack.c.l.b16 %v40
  %v119 = vunpack.c.l.b16 %v41
  %v120 = vunpack.c.l.b16 %v42
  %v121 = vunpack.c.l.b16 %v43
  %v122 = vunpack.c.l.b16 %v44
  %v123 = vpack.c.b16 %v116, %v115
  %v124 = vpack.c.b16 %v118, %v117
  %v125 = vpack.c.b16 %v120, %v119
  %v126 = vpack.c.b16 %v122, %v121
  %vm131 = vcmask 523264
  %v133 = vsel %vm131, %v96, 0
  %v136 = vsel %vm131, %v97, 0
  %v139 = vsel %vm131, %v98, 0
  %v142 = vsel %vm131, %v99, 0
  %v145 = vsel %vm131, %v100, 0
  %v148 = vsel %vm131, %v101, 0
  %v151 = vsel %vm131, %v102, 0
  %v154 = vsel %vm131, %v103, 0
  %v157 = vsel %vm131, %v104, 0
  %v160 = vsel %vm131, %v105, 0
  %v163 = vsel %vm131, %v106, 0
  %165 = vmatprep.subr.bf16.mxu0 0
  %166 = vmatpush1.bf16.msra.mxu0 %v123
  %167 = vmatprep.subr.bf16.mxu0 0
  %168 = vmatpush1.bf16.msra.mxu0 %v124
  %169 = vmatprep.subr.bf16.mxu0 0
  %170 = vmatpush1.bf16.msra.mxu0 %v125
  %171 = vmatprep.subr.bf16.mxu0 0
  %172 = vmatpush1.bf16.msra.mxu0 %v126
  %173 = vmatprep.subr.bf16.mxu0 0
  %174 = vmatpush1.bf16.msra.mxu0 0
  %175 = vmatprep.subr.bf16.mxu0 0
  %176 = vmatpush1.bf16.msra.mxu0 0
  %177 = vmatprep.subr.bf16.mxu0 0
  %178 = vmatpush1.bf16.msra.mxu0 0
  %179 = vmatprep.subr.bf16.mxu0 0
  %180 = vmatpush1.bf16.msra.mxu0 0
  %181 = vmatprep.subr.bf16.mxu0 0
  %182 = vmatpush1.bf16.msra.mxu0 0
  %183 = vmatprep.subr.bf16.mxu0 0
  %184 = vmatpush1.bf16.msra.mxu0 0
  %185 = vmatprep.subr.bf16.mxu0 0
  %186 = vmatpush1.bf16.msra.mxu0 0
  %187 = vmatprep.subr.bf16.mxu0 0
  %188 = vmatpush1.bf16.msra.mxu0 0
  %189 = vmatprep.subr.bf16.mxu0 0
  %190 = vmatpush1.bf16.msra.mxu0 0
  %191 = vmatprep.subr.bf16.mxu0 0
  %192 = vmatpush1.bf16.msra.mxu0 0
  %193 = vmatprep.subr.bf16.mxu0 0
  %194 = vmatpush1.bf16.msra.mxu0 0
  %195 = vmatprep.subr.bf16.mxu0 0
  %196 = vmatpush1.bf16.msra.mxu0 0
  %197 = vmatprep.mubr.bf16.mxu0 0
  %198 = vmatmul.mubr.bf16.gmra.mrb[0].mxu0 %v133
  %v199 = vpop.f32.mrb[0].mxu0
  %v200 = vadd.f32 %v50, %v199
  %v201 = vpop.f32.mrb[0].mxu0
  %v202 = vpop.f32.mrb[0].mxu0
  %v203 = vadd.f32 %v50, %v202
  %v204 = vpop.f32.mrb[0].mxu0
  %205 = vmatprep.mubr.bf16.mxu0 0
  %206 = vmatmul.mubr.bf16.gmra.mrb[0].mxu0 %v136
  %v207 = vpop.f32.mrb[0].mxu0
  %v208 = vadd.f32 %v50, %v207
  %v209 = vpop.f32.mrb[0].mxu0
  %v210 = vpop.f32.mrb[0].mxu0
  %v211 = vadd.f32 %v50, %v210
  %v212 = vpop.f32.mrb[0].mxu0
  %213 = vmatprep.mubr.bf16.mxu0 0
  %214 = vmatmul.mubr.bf16.gmra.mrb[0].mxu0 %v139
  %v215 = vpop.f32.mrb[0].mxu0
  %v216 = vadd.f32 %v50, %v215
  %v217 = vpop.f32.mrb[0].mxu0
  %v218 = vpop.f32.mrb[0].mxu0
  %v219 = vadd.f32 %v50, %v218
  %v220 = vpop.f32.mrb[0].mxu0
  %221 = vmatprep.mubr.bf16.mxu0 0
  %222 = vmatmul.mubr.bf16.gmra.mrb[0].mxu0 %v142
  %v223 = vpop.f32.mrb[0].mxu0
  %v224 = vadd.f32 %v50, %v223
  %v225 = vpop.f32.mrb[0].mxu0
  %v226 = vpop.f32.mrb[0].mxu0
  %v227 = vadd.f32 %v50, %v226
  %v228 = vpop.f32.mrb[0].mxu0
  %229 = vmatprep.mubr.bf16.mxu0 0
  %230 = vmatmul.mubr.bf16.gmra.mrb[0].mxu0 %v145
  %v231 = vpop.f32.mrb[0].mxu0
  %v232 = vadd.f32 %v50, %v231
  %v233 = vpop.f32.mrb[0].mxu0
  %v234 = vpop.f32.mrb[0].mxu0
  %v235 = vadd.f32 %v50, %v234
  %v236 = vpop.f32.mrb[0].mxu0
  %237 = vmatprep.mubr.bf16.mxu0 0
  %238 = vmatmul.mubr.bf16.gmra.mrb[0].mxu0 %v148
  %v239 = vpop.f32.mrb[0].mxu0
  %v240 = vadd.f32 %v50, %v239
  %v241 = vpop.f32.mrb[0].mxu0
  %v242 = vpop.f32.mrb[0].mxu0
  %v243 = vadd.f32 %v50, %v242
  %v244 = vpop.f32.mrb[0].mxu0
  %245 = vmatprep.mubr.bf16.mxu0 0
  %246 = vmatmul.mubr.bf16.gmra.mrb[0].mxu0 %v151
  %v247 = vpop.f32.mrb[0].mxu0
  %v248 = vadd.f32 %v50, %v247
  %v249 = vpop.f32.mrb[0].mxu0
  %v250 = vpop.f32.mrb[0].mxu0
  %v251 = vadd.f32 %v50, %v250
  %v252 = vpop.f32.mrb[0].mxu0
  %253 = vmatprep.mubr.bf16.mxu0 0
  %254 = vmatmul.mubr.bf16.gmra.mrb[0].mxu0 %v154
  %v255 = vpop.f32.mrb[0].mxu0
  %v256 = vadd.f32 %v50, %v255
  %v257 = vpop.f32.mrb[0].mxu0
  %v258 = vpop.f32.mrb[0].mxu0
  %v259 = vadd.f32 %v50, %v258
  %v260 = vpop.f32.mrb[0].mxu0
  %261 = vmatprep.mubr.bf16.mxu0 0
  %262 = vmatmul.mubr.bf16.gmra.mrb[0].mxu0 %v157
  %v263 = vpop.f32.mrb[0].mxu0
  %v264 = vadd.f32 %v50, %v263
  %v265 = vpop.f32.mrb[0].mxu0
  %v266 = vpop.f32.mrb[0].mxu0
  %v267 = vadd.f32 %v50, %v266
  %v268 = vpop.f32.mrb[0].mxu0
  %269 = vmatprep.mubr.bf16.mxu0 0
  %270 = vmatmul.mubr.bf16.gmra.mrb[0].mxu0 %v160
  %v271 = vpop.f32.mrb[0].mxu0
  %v272 = vadd.f32 %v50, %v271
  %v273 = vpop.f32.mrb[0].mxu0
  %v274 = vpop.f32.mrb[0].mxu0
  %v275 = vadd.f32 %v50, %v274
  %v276 = vpop.f32.mrb[0].mxu0
  %277 = vmatprep.mubr.bf16.mxu0 0
  %278 = vmatmul.mubr.bf16.gmra.mrb[0].mxu0 %v163
  %v279 = vpop.f32.mrb[0].mxu0
  %v280 = vadd.f32 %v50, %v279
  %v281 = vpop.f32.mrb[0].mxu0
  %v282 = vpop.f32.mrb[0].mxu0
  %v283 = vadd.f32 %v50, %v282
  %v284 = vpop.f32.mrb[0].mxu0
  %285 = vdwg.mxu0
  %v286 = vmul.f32 %v200, 0.2
  %v287 = vmul.f32 %v203, 0.2
  %v288 = vmul.f32 %v208, 0.2
  %v289 = vmul.f32 %v211, 0.2
  %v290 = vmul.f32 %v216, 0.2
  %v291 = vmul.f32 %v219, 0.2
  %v292 = vmul.f32 %v224, 0.2
  %v293 = vmul.f32 %v227, 0.2
  %v294 = vmul.f32 %v232, 0.2
  %v295 = vmul.f32 %v235, 0.2
  %v296 = vmul.f32 %v240, 0.2
  %v297 = vmul.f32 %v243, 0.2
  %v298 = vmul.f32 %v248, 0.2
  %v299 = vmul.f32 %v251, 0.2
  %v300 = vmul.f32 %v256, 0.2
  %v301 = vmul.f32 %v259, 0.2
  %v302 = vmul.f32 %v264, 0.2
  %v303 = vmul.f32 %v267, 0.2
  %v304 = vmul.f32 %v272, 0.2
  %v305 = vmul.f32 %v275, 0.2
  %v306 = vmul.f32 %v280, 0.2
  %v307 = vmul.f32 %v283, 0.2
  %v308 = vmax.f32 %v200, %v286
  %v309 = vmax.f32 %v203, %v287
  %v310 = vmax.f32 %v208, %v288
  %v311 = vmax.f32 %v211, %v289
  %v312 = vmax.f32 %v216, %v290
  %v313 = vmax.f32 %v219, %v291
  %v314 = vmax.f32 %v224, %v292
  %v315 = vmax.f32 %v227, %v293
  %v316 = vmax.f32 %v232, %v294
  %v317 = vmax.f32 %v235, %v295
  %v318 = vmax.f32 %v240, %v296
  %v319 = vmax.f32 %v243, %v297
  %v320 = vmax.f32 %v248, %v298
  %v321 = vmax.f32 %v251, %v299
  %v322 = vmax.f32 %v256, %v300
  %v323 = vmax.f32 %v259, %v301
  %v324 = vmax.f32 %v264, %v302
  %v325 = vmax.f32 %v267, %v303
  %v326 = vmax.f32 %v272, %v304
  %v327 = vmax.f32 %v275, %v305
  %v328 = vmax.f32 %v280, %v306
  %v329 = vmax.f32 %v283, %v307
  %v330 = vpack.c.bf16 %v309, %v308
  %v331 = vpack.c.bf16 %v311, %v310
  %v332 = vpack.c.bf16 %v313, %v312
  %v333 = vpack.c.bf16 %v315, %v314
  %v334 = vpack.c.bf16 %v317, %v316
  %v335 = vpack.c.bf16 %v319, %v318
  %v336 = vpack.c.bf16 %v321, %v320
  %v337 = vpack.c.bf16 %v323, %v322
  %v338 = vpack.c.bf16 %v325, %v324
  %v339 = vpack.c.bf16 %v327, %v326
  %v340 = vpack.c.bf16 %v329, %v328
  %v352 = vunpack.c.l.b16 %v330
  %v353 = vunpack.c.h.b16 %v330
  %v354 = vunpack.c.l.b16 %v331
  %v355 = vunpack.c.h.b16 %v331
  %v356 = vunpack.c.l.b16 %v332
  %v357 = vunpack.c.h.b16 %v332
  %v358 = vunpack.c.l.b16 %v333
  %v359 = vunpack.c.h.b16 %v333
  %v360 = vunpack.c.l.b16 %v334
  %v361 = vunpack.c.h.b16 %v334
  %v362 = vunpack.c.l.b16 %v335
  %v363 = vunpack.c.h.b16 %v335
  %v364 = vunpack.c.l.b16 %v336
  %v365 = vunpack.c.h.b16 %v336
  %v366 = vunpack.c.l.b16 %v337
  %v367 = vunpack.c.h.b16 %v337
  %v368 = vunpack.c.l.b16 %v338
  %v369 = vunpack.c.h.b16 %v338
  %v370 = vunpack.c.l.b16 %v339
  %v371 = vunpack.c.h.b16 %v339
  %v372 = vunpack.c.l.b16 %v340
  %v373 = vunpack.c.h.b16 %v340
  %v374 = vpack.c.b16 %v352, %v352
  %v375 = vpack.c.b16 %v353, %v353
  %v376 = vpack.c.b16 %v354, %v354
  %v377 = vpack.c.b16 %v355, %v355
  %v378 = vpack.c.b16 %v356, %v356
  %v379 = vpack.c.b16 %v357, %v357
  %v380 = vpack.c.b16 %v358, %v358
  %v381 = vpack.c.b16 %v359, %v359
  %v382 = vpack.c.b16 %v360, %v360
  %v383 = vpack.c.b16 %v361, %v361
  %v384 = vpack.c.b16 %v362, %v362
  %v385 = vpack.c.b16 %v363, %v363
  %v386 = vpack.c.b16 %v364, %v364
  %v387 = vpack.c.b16 %v365, %v365
  %v388 = vpack.c.b16 %v366, %v366
  %v389 = vpack.c.b16 %v367, %v367
  %v390 = vpack.c.b16 %v368, %v368
  %v391 = vpack.c.b16 %v369, %v369
  %v392 = vpack.c.b16 %v370, %v370
  %v393 = vpack.c.b16 %v371, %v371
  %v394 = vpack.c.b16 %v372, %v372
  %v395 = vpack.c.b16 %v373, %v373
  %418 = vst [vmem:[%s3] sm:$0xf] %v374
  %419 = vst [vmem:[%s3 + $0x4] sm:$0xf] %v375
  %420 = vst [vmem:[%s3 + $0x8] sm:$0xf] %v376
  %421 = vst [vmem:[%s3 + $0xc] sm:$0xf] %v377
  %422 = vst [vmem:[%s3 + $0x10] sm:$0xf] %v378
  %423 = vst [vmem:[%s3 + $0x14] sm:$0xf] %v379
  %424 = vst [vmem:[%s3 + $0x18] sm:$0xf] %v380
  %425 = vst [vmem:[%s3 + $0x1c] sm:$0xf] %v381
  %426 = vst [vmem:[%s3 + $0x20] sm:$0xf] %v382
  %427 = vst [vmem:[%s3 + $0x24] sm:$0xf] %v383
  %428 = vst [vmem:[%s3 + $0x28] sm:$0xf] %v384
  %429 = vst [vmem:[%s3 + $0x2c] sm:$0xf] %v385
  %430 = vst [vmem:[%s3 + $0x30] sm:$0xf] %v386
  %431 = vst [vmem:[%s3 + $0x34] sm:$0xf] %v387
  %432 = vst [vmem:[%s3 + $0x38] sm:$0xf] %v388
  %433 = vst [vmem:[%s3 + $0x3c] sm:$0xf] %v389
  %434 = vst [vmem:[%s3 + $0x40] sm:$0xf] %v390
  %435 = vst [vmem:[%s3 + $0x44] sm:$0xf] %v391
  %436 = vst [vmem:[%s3 + $0x48] sm:$0xf] %v392
  %437 = vst [vmem:[%s3 + $0x4c] sm:$0xf] %v393
  %438 = vst [vmem:[%s3 + $0x50] sm:$0xf] %v394
  %439 = vst [vmem:[%s3 + $0x54] sm:$0xf] %v395
  // Predicated region
  $region14: #{_lambda_.5} parent=0 // pred_check
    _
  $region15: #{_lambda_.5} parent=0 // pred_check_branch
    %441 = sbr.rel (0) target = $region17
  $region16: #{_lambda_.5} parent=0 // pred_region
    _
  $region17: #{_lambda_.5} parent=0 // pred_fallthru
    _
  // Predicated region
  $region18: #{_lambda_.5} parent=0 // pred_check
    _
  $region19: #{_lambda_.5} parent=0 // pred_check_branch
    %443 = sbr.rel (0) target = $region21
  $region20: #{_lambda_.5} parent=0 // pred_region
    _
  $region21: #{_lambda_.5} parent=0 // pred_fallthru
    _

// kernel: _lambda_.6
$region0: #{_lambda_.6}
  #allocation0 [shape = 'u32[]', space=smem, size = 0x4, offset = 0x4, fixed_abs, tag = 'smem constant byte address 0x4 - core index']
  #allocation1 [shape = 'u32[144,128]{1,0:T(1,128)}', space=vmem, size = 0x12000, scoped, tag = 'internal scratch']
  %s0 = inlined_call_operand.vmem [shape: bf16[64,128], index: 0, kind: input, shape index: {}]
  %s1 = inlined_call_operand.vmem [shape: bf16[128,128], index: 1, kind: input, shape index: {}]
  %s2 = inlined_call_operand.vmem [shape: f32[1,128], index: 2, kind: input, shape index: {}]
  %s3 = inlined_call_operand.vmem [shape: f32[1,128], index: 3, kind: input, shape index: {}]
  %s4 = inlined_call_operand.vmem [shape: bf16[64,128], index: 4, kind: output, shape index: {}]
  %s5 = sld [smem:[#allocation0]]
  $region26: #{_lambda_.6} parent=0
    _
  %s7 = ssub.s32 1, %s5
  %s8 = scalar_select 0, %s7, %s5
  // Predicated region
  $region2: #{_lambda_.6} parent=0 // pred_check
    _
  $region3: #{_lambda_.6} parent=0 // pred_check_branch
    %10 = sbr.rel (0) target = $region5
  $region4: #{_lambda_.6} parent=0 // pred_region
    _
  $region5: #{_lambda_.6} parent=0 // pred_fallthru
    _
  // Predicated region
  $region6: #{_lambda_.6} parent=0 // pred_check
    _
  $region7: #{_lambda_.6} parent=0 // pred_check_branch
    %12 = sbr.rel (0) target = $region9
  $region8: #{_lambda_.6} parent=0 // pred_region
    _
  $region9: #{_lambda_.6} parent=0 // pred_fallthru
    _
  // Predicated region
  $region10: #{_lambda_.6} parent=0 // pred_check
    _
  $region11: #{_lambda_.6} parent=0 // pred_check_branch
    %14 = sbr.rel (0) target = $region13
  $region12: #{_lambda_.6} parent=0 // pred_region
    _
  $region13: #{_lambda_.6} parent=0 // pred_fallthru
    _
  // Predicated region
  $region14: #{_lambda_.6} parent=0 // pred_check
    _
  $region15: #{_lambda_.6} parent=0 // pred_check_branch
    %16 = sbr.rel (0) target = $region17
  $region16: #{_lambda_.6} parent=0 // pred_region
    _
  $region17: #{_lambda_.6} parent=0 // pred_fallthru
    _
  %v18 = vld [vmem:[%s0] sm:$0xf]
  %v19 = vld [vmem:[%s0 + $0x4] sm:$0xf]
  %v20 = vld [vmem:[%s0 + $0x8] sm:$0xf]
  %v21 = vld [vmem:[%s0 + $0xc] sm:$0xf]
  %v22 = vld [vmem:[%s0 + $0x10] sm:$0xf]
  %v23 = vld [vmem:[%s0 + $0x14] sm:$0xf]
  %v24 = vld [vmem:[%s0 + $0x18] sm:$0xf]
  %v25 = vld [vmem:[%s0 + $0x1c] sm:$0xf]
  %v26 = vld [vmem:[%s1] sm:$0xf]
  %v27 = vld [vmem:[%s1 + $0x4] sm:$0xf]
  %v28 = vld [vmem:[%s1 + $0x8] sm:$0xf]
  %v29 = vld [vmem:[%s1 + $0xc] sm:$0xf]
  %v30 = vld [vmem:[%s1 + $0x10] sm:$0xf]
  %v31 = vld [vmem:[%s1 + $0x14] sm:$0xf]
  %v32 = vld [vmem:[%s1 + $0x18] sm:$0xf]
  %v33 = vld [vmem:[%s1 + $0x1c] sm:$0xf]
  %v34 = vld [vmem:[%s1 + $0x20] sm:$0xf]
  %v35 = vld [vmem:[%s1 + $0x24] sm:$0xf]
  %v36 = vld [vmem:[%s1 + $0x28] sm:$0xf]
  %v37 = vld [vmem:[%s1 + $0x2c] sm:$0xf]
  %v38 = vld [vmem:[%s1 + $0x30] sm:$0xf]
  %v39 = vld [vmem:[%s1 + $0x34] sm:$0xf]
  %v40 = vld [vmem:[%s1 + $0x38] sm:$0xf]
  %v41 = vld [vmem:[%s1 + $0x3c] sm:$0xf]
  %v50 = vunpack.c.l.b16 %v18
  %v51 = vunpack.c.l.b16 %v19
  %v52 = vunpack.c.l.b16 %v20
  %v53 = vunpack.c.l.b16 %v21
  %v54 = vunpack.c.l.b16 %v22
  %v55 = vunpack.c.l.b16 %v23
  %v56 = vunpack.c.l.b16 %v24
  %v57 = vunpack.c.l.b16 %v25
  %v58 = vpack.c.b16 %v51, %v50
  %v59 = vpack.c.b16 %v53, %v52
  %v60 = vpack.c.b16 %v55, %v54
  %v61 = vpack.c.b16 %v57, %v56
  %v82 = vunpack.c.l.b16 %v26
  %v83 = vunpack.c.l.b16 %v27
  %v84 = vunpack.c.l.b16 %v28
  %v85 = vunpack.c.l.b16 %v29
  %v86 = vunpack.c.l.b16 %v30
  %v87 = vunpack.c.l.b16 %v31
  %v88 = vunpack.c.l.b16 %v32
  %v89 = vunpack.c.l.b16 %v33
  %v90 = vunpack.c.l.b16 %v34
  %v91 = vunpack.c.l.b16 %v35
  %v92 = vunpack.c.l.b16 %v36
  %v93 = vunpack.c.l.b16 %v37
  %v94 = vunpack.c.l.b16 %v38
  %v95 = vunpack.c.l.b16 %v39
  %v96 = vunpack.c.l.b16 %v40
  %v97 = vunpack.c.l.b16 %v41
  %v98 = vpack.c.b16 %v83, %v82
  %v99 = vpack.c.b16 %v85, %v84
  %v100 = vpack.c.b16 %v87, %v86
  %v101 = vpack.c.b16 %v89, %v88
  %v102 = vpack.c.b16 %v91, %v90
  %v103 = vpack.c.b16 %v93, %v92
  %v104 = vpack.c.b16 %v95, %v94
  %v105 = vpack.c.b16 %v97, %v96
  %114 = vmatprep.subr.bf16.mxu0 0
  %115 = vmatpush1.bf16.msra.mxu0 %v98
  %116 = vmatprep.subr.bf16.mxu0 0
  %117 = vmatpush1.bf16.msra.mxu0 %v99
  %118 = vmatprep.subr.bf16.mxu0 0
  %119 = vmatpush1.bf16.msra.mxu0 %v100
  %120 = vmatprep.subr.bf16.mxu0 0
  %121 = vmatpush1.bf16.msra.mxu0 %v101
  %122 = vmatprep.subr.bf16.mxu0 0
  %123 = vmatpush1.bf16.msra.mxu0 %v102
  %124 = vmatprep.subr.bf16.mxu0 0
  %125 = vmatpush1.bf16.msra.mxu0 %v103
  %126 = vmatprep.subr.bf16.mxu0 0
  %127 = vmatpush1.bf16.msra.mxu0 %v104
  %128 = vmatprep.subr.bf16.mxu0 0
  %129 = vmatpush1.bf16.msra.mxu0 %v105
  %130 = vmatprep.subr.bf16.mxu0 0
  %131 = vmatpush1.bf16.msra.mxu0 0
  %132 = vmatprep.subr.bf16.mxu0 0
  %133 = vmatpush1.bf16.msra.mxu0 0
  %134 = vmatprep.subr.bf16.mxu0 0
  %135 = vmatpush1.bf16.msra.mxu0 0
  %136 = vmatprep.subr.bf16.mxu0 0
  %137 = vmatpush1.bf16.msra.mxu0 0
  %138 = vmatprep.subr.bf16.mxu0 0
  %139 = vmatpush1.bf16.msra.mxu0 0
  %140 = vmatprep.subr.bf16.mxu0 0
  %141 = vmatpush1.bf16.msra.mxu0 0
  %142 = vmatprep.subr.bf16.mxu0 0
  %143 = vmatpush1.bf16.msra.mxu0 0
  %144 = vmatprep.subr.bf16.mxu0 0
  %145 = vmatpush1.bf16.msra.mxu0 0
  %146 = vmatprep.mubr.bf16.mxu0 0
  %147 = vmatmul.mubr.bf16.gmra.mrb[0].mxu0 %v58
  %v148 = vpop.f32.mrb[0].mxu0
  %v149 = vadd.f32 0.0, %v148
  %v150 = vpop.f32.mrb[0].mxu0
  %v151 = vpop.f32.mrb[0].mxu0
  %v152 = vadd.f32 0.0, %v151
  %v153 = vpop.f32.mrb[0].mxu0
  %154 = vmatprep.mubr.bf16.mxu0 0
  %155 = vmatmul.mubr.bf16.gmra.mrb[0].mxu0 %v59
  %v156 = vpop.f32.mrb[0].mxu0
  %v157 = vadd.f32 0.0, %v156
  %v158 = vpop.f32.mrb[0].mxu0
  %v159 = vpop.f32.mrb[0].mxu0
  %v160 = vadd.f32 0.0, %v159
  %v161 = vpop.f32.mrb[0].mxu0
  %162 = vmatprep.mubr.bf16.mxu0 0
  %163 = vmatmul.mubr.bf16.gmra.mrb[0].mxu0 %v60
  %v164 = vpop.f32.mrb[0].mxu0
  %v165 = vadd.f32 0.0, %v164
  %v166 = vpop.f32.mrb[0].mxu0
  %v167 = vpop.f32.mrb[0].mxu0
  %v168 = vadd.f32 0.0, %v167
  %v169 = vpop.f32.mrb[0].mxu0
  %170 = vmatprep.mubr.bf16.mxu0 0
  %171 = vmatmul.mubr.bf16.gmra.mrb[0].mxu0 %v61
  %v172 = vpop.f32.mrb[0].mxu0
  %v173 = vadd.f32 0.0, %v172
  %v174 = vpop.f32.mrb[0].mxu0
  %v175 = vpop.f32.mrb[0].mxu0
  %v176 = vadd.f32 0.0, %v175
  %v177 = vpop.f32.mrb[0].mxu0
  %178 = vdwg.mxu0
  %v179 = vadd.f32 %v149, %v152
  %v180 = vadd.f32 %v179, %v157
  %v181 = vadd.f32 %v180, %v160
  %v182 = vadd.f32 %v181, %v165
  %v183 = vadd.f32 %v182, %v168
  %v184 = vadd.f32 %v183, %v173
  %v185 = vadd.f32 %v184, %v176
  %v186 = vrot.slane %v185, 4
  %v187 = vadd.f32 %v185, %v186
  %v188 = vrot.slane %v187, 2
  %v189 = vadd.f32 %v187, %v188
  %v190 = vrot.slane %v189, 1
  %v191 = vadd.f32 %v189, %v190
  %v192 = vmul.f32 %v149, %v149
  %v193 = vmul.f32 %v152, %v152
  %v194 = vmul.f32 %v157, %v157
  %v195 = vmul.f32 %v160, %v160
  %v196 = vmul.f32 %v165, %v165
  %v197 = vmul.f32 %v168, %v168
  %v198 = vmul.f32 %v173, %v173
  %v199 = vmul.f32 %v176, %v176
  %v200 = vadd.f32 %v192, %v193
  %v201 = vadd.f32 %v200, %v194
  %v202 = vadd.f32 %v201, %v195
  %v203 = vadd.f32 %v202, %v196
  %v204 = vadd.f32 %v203, %v197
  %v205 = vadd.f32 %v204, %v198
  %v206 = vadd.f32 %v205, %v199
  %v207 = vrot.slane %v206, 4
  %v208 = vadd.f32 %v206, %v207
  %v209 = vrot.slane %v208, 2
  %v210 = vadd.f32 %v208, %v209
  %v211 = vrot.slane %v210, 1
  %v212 = vadd.f32 %v210, %v211
  %v213 = vmul.f32 %v191, 0.02
  %v214 = vmul.f32 %v212, 0.02
  %v215 = vmul.f32 %v213, %v213
  %v216 = vsub.f32 %v214, %v215
  %v217 = vmax.f32 %v216, 0.0
  %v218 = vld [vmem:[%s2] sm:$0x1]
  %v219 = vadd.f32 %v217, 1e-05
  %v220 = vrsqrt.pop %v219
  %v221 = vmul.f32 %v218, %v220
  %v222 = vld [vmem:[%s3] sm:$0x1]
  %v223 = vmul.f32 %v213, %v221
  %v224 = vsub.f32 %v222, %v223
  %v226 = vlaneseq
  %v227 = vshrl.u32 %v226, 7
  %v228 = vsub.s32 0, %v227
  %v229 = vrot.slane %v221, %v228
  %v231 = vmul.f32 %v149, %v229
  %v232 = vmul.f32 %v152, %v229
  %v233 = vmul.f32 %v157, %v229
  %v234 = vmul.f32 %v160, %v229
  %v235 = vmul.f32 %v165, %v229
  %v236 = vmul.f32 %v168, %v229
  %v237 = vmul.f32 %v173, %v229
  %v238 = vmul.f32 %v176, %v229
  %v240 = vlaneseq
  %v241 = vshrl.u32 %v240, 7
  %v242 = vsub.s32 0, %v241
  %v243 = vrot.slane %v224, %v242
  %v245 = vadd.f32 %v231, %v243
  %v246 = vadd.f32 %v232, %v243
  %v247 = vadd.f32 %v233, %v243
  %v248 = vadd.f32 %v234, %v243
  %v249 = vadd.f32 %v235, %v243
  %v250 = vadd.f32 %v236, %v243
  %v251 = vadd.f32 %v237, %v243
  %v252 = vadd.f32 %v238, %v243
  %v253 = vmul.f32 %v245, 0.2
  %v254 = vmul.f32 %v246, 0.2
  %v255 = vmul.f32 %v247, 0.2
  %v256 = vmul.f32 %v248, 0.2
  %v257 = vmul.f32 %v249, 0.2
  %v258 = vmul.f32 %v250, 0.2
  %v259 = vmul.f32 %v251, 0.2
  %v260 = vmul.f32 %v252, 0.2
  %v261 = vmax.f32 %v245, %v253
  %v262 = vmax.f32 %v246, %v254
  %v263 = vmax.f32 %v247, %v255
  %v264 = vmax.f32 %v248, %v256
  %v265 = vmax.f32 %v249, %v257
  %v266 = vmax.f32 %v250, %v258
  %v267 = vmax.f32 %v251, %v259
  %v268 = vmax.f32 %v252, %v260
  %v269 = vpack.c.bf16 %v262, %v261
  %v270 = vpack.c.bf16 %v264, %v263
  %v271 = vpack.c.bf16 %v266, %v265
  %v272 = vpack.c.bf16 %v268, %v267
  %v277 = vunpack.c.l.b16 %v269
  %v278 = vunpack.c.h.b16 %v269
  %v279 = vunpack.c.l.b16 %v270
  %v280 = vunpack.c.h.b16 %v270
  %v281 = vunpack.c.l.b16 %v271
  %v282 = vunpack.c.h.b16 %v271
  %v283 = vunpack.c.l.b16 %v272
  %v284 = vunpack.c.h.b16 %v272
  %v285 = vpack.c.b16 %v277, %v277
  %v286 = vpack.c.b16 %v278, %v278
  %v287 = vpack.c.b16 %v279, %v279
  %v288 = vpack.c.b16 %v280, %v280
  %v289 = vpack.c.b16 %v281, %v281
  %v290 = vpack.c.b16 %v282, %v282
  %v291 = vpack.c.b16 %v283, %v283
  %v292 = vpack.c.b16 %v284, %v284
  %301 = vst [vmem:[%s4] sm:$0xf] %v285
  %302 = vst [vmem:[%s4 + $0x4] sm:$0xf] %v286
  %303 = vst [vmem:[%s4 + $0x8] sm:$0xf] %v287
  %304 = vst [vmem:[%s4 + $0xc] sm:$0xf] %v288
  %305 = vst [vmem:[%s4 + $0x10] sm:$0xf] %v289
  %306 = vst [vmem:[%s4 + $0x14] sm:$0xf] %v290
  %307 = vst [vmem:[%s4 + $0x18] sm:$0xf] %v291
  %308 = vst [vmem:[%s4 + $0x1c] sm:$0xf] %v292
  // Predicated region
  $region18: #{_lambda_.6} parent=0 // pred_check
    _
  $region19: #{_lambda_.6} parent=0 // pred_check_branch
    %310 = sbr.rel (0) target = $region21
  $region20: #{_lambda_.6} parent=0 // pred_region
    _
  $region21: #{_lambda_.6} parent=0 // pred_fallthru
    _
  // Predicated region
  $region22: #{_lambda_.6} parent=0 // pred_check
    _
  $region23: #{_lambda_.6} parent=0 // pred_check_branch
    %312 = sbr.rel (0) target = $region25
  $region24: #{_lambda_.6} parent=0 // pred_region
    _
  $region25: #{_lambda_.6} parent=0 // pred_fallthru
    _

// kernel: _lambda_.7
$region0: #{_lambda_.7}
  #allocation0 [shape = 'u32[]', space=smem, size = 0x4, offset = 0x4, fixed_abs, tag = 'smem constant byte address 0x4 - core index']
  #allocation1 [shape = 'u32[144,128]{1,0:T(1,128)}', space=vmem, size = 0x12000, scoped, tag = 'internal scratch']
  %s0 = inlined_call_operand.vmem [shape: bf16[32,256], index: 0, kind: input, shape index: {}]
  %s1 = inlined_call_operand.vmem [shape: bf16[256,128], index: 1, kind: input, shape index: {}]
  %s2 = inlined_call_operand.vmem [shape: f32[1,128], index: 2, kind: input, shape index: {}]
  %s3 = inlined_call_operand.vmem [shape: f32[1,128], index: 3, kind: input, shape index: {}]
  %s4 = inlined_call_operand.vmem [shape: bf16[32,128], index: 4, kind: output, shape index: {}]
  %s5 = sld [smem:[#allocation0]]
  $region26: #{_lambda_.7} parent=0
    _
  %s7 = ssub.s32 1, %s5
  %s8 = scalar_select 0, %s7, %s5
  // Predicated region
  $region2: #{_lambda_.7} parent=0 // pred_check
    _
  $region3: #{_lambda_.7} parent=0 // pred_check_branch
    %10 = sbr.rel (0) target = $region5
  $region4: #{_lambda_.7} parent=0 // pred_region
    _
  $region5: #{_lambda_.7} parent=0 // pred_fallthru
    _
  // Predicated region
  $region6: #{_lambda_.7} parent=0 // pred_check
    _
  $region7: #{_lambda_.7} parent=0 // pred_check_branch
    %12 = sbr.rel (0) target = $region9
  $region8: #{_lambda_.7} parent=0 // pred_region
    _
  $region9: #{_lambda_.7} parent=0 // pred_fallthru
    _
  // Predicated region
  $region10: #{_lambda_.7} parent=0 // pred_check
    _
  $region11: #{_lambda_.7} parent=0 // pred_check_branch
    %14 = sbr.rel (0) target = $region13
  $region12: #{_lambda_.7} parent=0 // pred_region
    _
  $region13: #{_lambda_.7} parent=0 // pred_fallthru
    _
  // Predicated region
  $region14: #{_lambda_.7} parent=0 // pred_check
    _
  $region15: #{_lambda_.7} parent=0 // pred_check_branch
    %16 = sbr.rel (0) target = $region17
  $region16: #{_lambda_.7} parent=0 // pred_region
    _
  $region17: #{_lambda_.7} parent=0 // pred_fallthru
    _
  %v18 = vld [vmem:[%s0] sm:$0xff]
  %v19 = vld [vmem:[%s0 + $0x8] sm:$0xff]
  %v20 = vld [vmem:[%s0 + $0x10] sm:$0xff]
  %v21 = vld [vmem:[%s0 + $0x18] sm:$0xff]
  %v22 = vld [vmem:[%s1] sm:$0xf]
  %v23 = vld [vmem:[%s1 + $0x4] sm:$0xf]
  %v24 = vld [vmem:[%s1 + $0x8] sm:$0xf]
  %v25 = vld [vmem:[%s1 + $0xc] sm:$0xf]
  %v26 = vld [vmem:[%s1 + $0x10] sm:$0xf]
  %v27 = vld [vmem:[%s1 + $0x14] sm:$0xf]
  %v28 = vld [vmem:[%s1 + $0x18] sm:$0xf]
  %v29 = vld [vmem:[%s1 + $0x1c] sm:$0xf]
  %v30 = vld [vmem:[%s1 + $0x20] sm:$0xf]
  %v31 = vld [vmem:[%s1 + $0x24] sm:$0xf]
  %v32 = vld [vmem:[%s1 + $0x28] sm:$0xf]
  %v33 = vld [vmem:[%s1 + $0x2c] sm:$0xf]
  %v34 = vld [vmem:[%s1 + $0x30] sm:$0xf]
  %v35 = vld [vmem:[%s1 + $0x34] sm:$0xf]
  %v36 = vld [vmem:[%s1 + $0x38] sm:$0xf]
  %v37 = vld [vmem:[%s1 + $0x3c] sm:$0xf]
  %v38 = vld [vmem:[%s1 + $0x40] sm:$0xf]
  %v39 = vld [vmem:[%s1 + $0x44] sm:$0xf]
  %v40 = vld [vmem:[%s1 + $0x48] sm:$0xf]
  %v41 = vld [vmem:[%s1 + $0x4c] sm:$0xf]
  %v42 = vld [vmem:[%s1 + $0x50] sm:$0xf]
  %v43 = vld [vmem:[%s1 + $0x54] sm:$0xf]
  %v44 = vld [vmem:[%s1 + $0x58] sm:$0xf]
  %v45 = vld [vmem:[%s1 + $0x5c] sm:$0xf]
  %v46 = vld [vmem:[%s1 + $0x60] sm:$0xf]
  %v47 = vld [vmem:[%s1 + $0x64] sm:$0xf]
  %v48 = vld [vmem:[%s1 + $0x68] sm:$0xf]
  %v49 = vld [vmem:[%s1 + $0x6c] sm:$0xf]
  %v50 = vld [vmem:[%s1 + $0x70] sm:$0xf]
  %v51 = vld [vmem:[%s1 + $0x74] sm:$0xf]
  %v52 = vld [vmem:[%s1 + $0x78] sm:$0xf]
  %v53 = vld [vmem:[%s1 + $0x7c] sm:$0xf]
  %v58 = vunpack.c.l.b16 %v18
  %v59 = vunpack.c.h.b16 %v18
  %v60 = vunpack.c.l.b16 %v19
  %v61 = vunpack.c.h.b16 %v19
  %v62 = vunpack.c.l.b16 %v20
  %v63 = vunpack.c.h.b16 %v20
  %v64 = vunpack.c.l.b16 %v21
  %v65 = vunpack.c.h.b16 %v21
  %v66 = vpack.c.b16 %v60, %v58
  %v67 = vpack.c.b16 %v61, %v59
  %v68 = vpack.c.b16 %v64, %v62
  %v69 = vpack.c.b16 %v65, %v63
  %v106 = vunpack.c.l.b16 %v22
  %v107 = vunpack.c.l.b16 %v23
  %v108 = vunpack.c.l.b16 %v24
  %v109 = vunpack.c.l.b16 %v25
  %v110 = vunpack.c.l.b16 %v26
  %v111 = vunpack.c.l.b16 %v27
  %v112 = vunpack.c.l.b16 %v28
  %v113 = vunpack.c.l.b16 %v29
  %v114 = vunpack.c.l.b16 %v30
  %v115 = vunpack.c.l.b16 %v31
  %v116 = vunpack.c.l.b16 %v32
  %v117 = vunpack.c.l.b16 %v33
  %v118 = vunpack.c.l.b16 %v34
  %v119 = vunpack.c.l.b16 %v35
  %v120 = vunpack.c.l.b16 %v36
  %v121 = vunpack.c.l.b16 %v37
  %v122 = vunpack.c.l.b16 %v38
  %v123 = vunpack.c.l.b16 %v39
  %v124 = vunpack.c.l.b16 %v40
  %v125 = vunpack.c.l.b16 %v41
  %v126 = vunpack.c.l.b16 %v42
  %v127 = vunpack.c.l.b16 %v43
  %v128 = vunpack.c.l.b16 %v44
  %v129 = vunpack.c.l.b16 %v45
  %v130 = vunpack.c.l.b16 %v46
  %v131 = vunpack.c.l.b16 %v47
  %v132 = vunpack.c.l.b16 %v48
  %v133 = vunpack.c.l.b16 %v49
  %v134 = vunpack.c.l.b16 %v50
  %v135 = vunpack.c.l.b16 %v51
  %v136 = vunpack.c.l.b16 %v52
  %v137 = vunpack.c.l.b16 %v53
  %v138 = vpack.c.b16 %v107, %v106
  %v139 = vpack.c.b16 %v109, %v108
  %v140 = vpack.c.b16 %v111, %v110
  %v141 = vpack.c.b16 %v113, %v112
  %v142 = vpack.c.b16 %v115, %v114
  %v143 = vpack.c.b16 %v117, %v116
  %v144 = vpack.c.b16 %v119, %v118
  %v145 = vpack.c.b16 %v121, %v120
  %v146 = vpack.c.b16 %v123, %v122
  %v147 = vpack.c.b16 %v125, %v124
  %v148 = vpack.c.b16 %v127, %v126
  %v149 = vpack.c.b16 %v129, %v128
  %v150 = vpack.c.b16 %v131, %v130
  %v151 = vpack.c.b16 %v133, %v132
  %v152 = vpack.c.b16 %v135, %v134
  %v153 = vpack.c.b16 %v137, %v136
  %170 = vmatprep.subr.bf16.mxu0 0
  %171 = vmatpush1.bf16.msra.mxu0 %v138
  %172 = vmatprep.subr.bf16.mxu0 0
  %173 = vmatpush1.bf16.msra.mxu0 %v139
  %174 = vmatprep.subr.bf16.mxu0 0
  %175 = vmatpush1.bf16.msra.mxu0 %v140
  %176 = vmatprep.subr.bf16.mxu0 0
  %177 = vmatpush1.bf16.msra.mxu0 %v141
  %178 = vmatprep.subr.bf16.mxu0 0
  %179 = vmatpush1.bf16.msra.mxu0 %v142
  %180 = vmatprep.subr.bf16.mxu0 0
  %181 = vmatpush1.bf16.msra.mxu0 %v143
  %182 = vmatprep.subr.bf16.mxu0 0
  %183 = vmatpush1.bf16.msra.mxu0 %v144
  %184 = vmatprep.subr.bf16.mxu0 0
  %185 = vmatpush1.bf16.msra.mxu0 %v145
  %186 = vmatprep.subr.bf16.mxu0 0
  %187 = vmatpush1.bf16.msra.mxu0 %v146
  %188 = vmatprep.subr.bf16.mxu0 0
  %189 = vmatpush1.bf16.msra.mxu0 %v147
  %190 = vmatprep.subr.bf16.mxu0 0
  %191 = vmatpush1.bf16.msra.mxu0 %v148
  %192 = vmatprep.subr.bf16.mxu0 0
  %193 = vmatpush1.bf16.msra.mxu0 %v149
  %194 = vmatprep.subr.bf16.mxu0 0
  %195 = vmatpush1.bf16.msra.mxu0 %v150
  %196 = vmatprep.subr.bf16.mxu0 0
  %197 = vmatpush1.bf16.msra.mxu0 %v151
  %198 = vmatprep.subr.bf16.mxu0 0
  %199 = vmatpush1.bf16.msra.mxu0 %v152
  %200 = vmatprep.subr.bf16.mxu0 0
  %201 = vmatpush1.bf16.msra.mxu0 %v153
  %202 = vmatprep.mubr.bf16.mxu0 %v67
  %203 = vmatmul.mubr.bf16.gmra.mrb[0].mxu0 %v66
  %v204 = vpop.f32.mrb[0].mxu0
  %v205 = vadd.f32 0.0, %v204
  %v206 = vpop.f32.mrb[0].mxu0
  %v207 = vpop.f32.mrb[0].mxu0
  %v208 = vadd.f32 0.0, %v207
  %v209 = vpop.f32.mrb[0].mxu0
  %210 = vmatprep.mubr.bf16.mxu0 %v69
  %211 = vmatmul.mubr.bf16.gmra.mrb[0].mxu0 %v68
  %v212 = vpop.f32.mrb[0].mxu0
  %v213 = vadd.f32 0.0, %v212
  %v214 = vpop.f32.mrb[0].mxu0
  %v215 = vpop.f32.mrb[0].mxu0
  %v216 = vadd.f32 0.0, %v215
  %v217 = vpop.f32.mrb[0].mxu0
  %218 = vdwg.mxu0
  %v219 = vadd.f32 %v205, %v208
  %v220 = vadd.f32 %v219, %v213
  %v221 = vadd.f32 %v220, %v216
  %v222 = vrot.slane %v221, 4
  %v223 = vadd.f32 %v221, %v222
  %v224 = vrot.slane %v223, 2
  %v225 = vadd.f32 %v223, %v224
  %v226 = vrot.slane %v225, 1
  %v227 = vadd.f32 %v225, %v226
  %v228 = vmul.f32 %v205, %v205
  %v229 = vmul.f32 %v208, %v208
  %v230 = vmul.f32 %v213, %v213
  %v231 = vmul.f32 %v216, %v216
  %v232 = vadd.f32 %v228, %v229
  %v233 = vadd.f32 %v232, %v230
  %v234 = vadd.f32 %v233, %v231
  %v235 = vrot.slane %v234, 4
  %v236 = vadd.f32 %v234, %v235
  %v237 = vrot.slane %v236, 2
  %v238 = vadd.f32 %v236, %v237
  %v239 = vrot.slane %v238, 1
  %v240 = vadd.f32 %v238, %v239
  %v241 = vmul.f32 %v227, 0.055555556
  %v242 = vmul.f32 %v240, 0.055555556
  %v243 = vmul.f32 %v241, %v241
  %v244 = vsub.f32 %v242, %v243
  %v245 = vmax.f32 %v244, 0.0
  %v246 = vld [vmem:[%s2] sm:$0x1]
  %v247 = vadd.f32 %v245, 1e-05
  %v248 = vrsqrt.pop %v247
  %v249 = vmul.f32 %v246, %v248
  %v250 = vld [vmem:[%s3] sm:$0x1]
  %v251 = vmul.f32 %v241, %v249
  %v252 = vsub.f32 %v250, %v251
  %v254 = vlaneseq
  %v255 = vshrl.u32 %v254, 7
  %v256 = vsub.s32 0, %v255
  %v257 = vrot.slane %v249, %v256
  %v259 = vmul.f32 %v205, %v257
  %v260 = vmul.f32 %v208, %v257
  %v261 = vmul.f32 %v213, %v257
  %v262 = vmul.f32 %v216, %v257
  %v264 = vlaneseq
  %v265 = vshrl.u32 %v264, 7
  %v266 = vsub.s32 0, %v265
  %v267 = vrot.slane %v252, %v266
  %v269 = vadd.f32 %v259, %v267
  %v270 = vadd.f32 %v260, %v267
  %v271 = vadd.f32 %v261, %v267
  %v272 = vadd.f32 %v262, %v267
  %v273 = vmul.f32 %v269, 0.2
  %v274 = vmul.f32 %v270, 0.2
  %v275 = vmul.f32 %v271, 0.2
  %v276 = vmul.f32 %v272, 0.2
  %v277 = vmax.f32 %v269, %v273
  %v278 = vmax.f32 %v270, %v274
  %v279 = vmax.f32 %v271, %v275
  %v280 = vmax.f32 %v272, %v276
  %v281 = vpack.c.bf16 %v278, %v277
  %v282 = vpack.c.bf16 %v280, %v279
  %v285 = vunpack.c.l.b16 %v281
  %v286 = vunpack.c.h.b16 %v281
  %v287 = vunpack.c.l.b16 %v282
  %v288 = vunpack.c.h.b16 %v282
  %v289 = vpack.c.b16 %v285, %v285
  %v290 = vpack.c.b16 %v286, %v286
  %v291 = vpack.c.b16 %v287, %v287
  %v292 = vpack.c.b16 %v288, %v288
  %297 = vst [vmem:[%s4] sm:$0xf] %v289
  %298 = vst [vmem:[%s4 + $0x4] sm:$0xf] %v290
  %299 = vst [vmem:[%s4 + $0x8] sm:$0xf] %v291
  %300 = vst [vmem:[%s4 + $0xc] sm:$0xf] %v292
  // Predicated region
  $region18: #{_lambda_.7} parent=0 // pred_check
    _
  $region19: #{_lambda_.7} parent=0 // pred_check_branch
    %302 = sbr.rel (0) target = $region21
  $region20: #{_lambda_.7} parent=0 // pred_region
    _
  $region21: #{_lambda_.7} parent=0 // pred_fallthru
    _
  // Predicated region
  $region22: #{_lambda_.7} parent=0 // pred_check
    _
  $region23: #{_lambda_.7} parent=0 // pred_check_branch
    %304 = sbr.rel (0) target = $region25
  $region24: #{_lambda_.7} parent=0 // pred_region
    _
  $region25: #{_lambda_.7} parent=0 // pred_fallthru
    _

// kernel: _lambda_.8
$region0: #{_lambda_.8}
  #allocation0 [shape = 'u32[]', space=smem, size = 0x4, offset = 0x4, fixed_abs, tag = 'smem constant byte address 0x4 - core index']
  #allocation1 [shape = 'u32[144,128]{1,0:T(1,128)}', space=vmem, size = 0x12000, scoped, tag = 'internal scratch']
  %s0 = inlined_call_operand.vmem [shape: bf16[32,512], index: 0, kind: input, shape index: {}]
  %s1 = inlined_call_operand.vmem [shape: bf16[512,128], index: 1, kind: input, shape index: {}]
  %s2 = inlined_call_operand.vmem [shape: f32[1,128], index: 2, kind: input, shape index: {}]
  %s3 = inlined_call_operand.vmem [shape: f32[1,128], index: 3, kind: input, shape index: {}]
  %s4 = inlined_call_operand.vmem [shape: bf16[32,128], index: 4, kind: output, shape index: {}]
  %s5 = sld [smem:[#allocation0]]
  $region26: #{_lambda_.8} parent=0
    _
  %s7 = ssub.s32 1, %s5
  %s8 = scalar_select 0, %s7, %s5
  // Predicated region
  $region2: #{_lambda_.8} parent=0 // pred_check
    _
  $region3: #{_lambda_.8} parent=0 // pred_check_branch
    %10 = sbr.rel (0) target = $region5
  $region4: #{_lambda_.8} parent=0 // pred_region
    _
  $region5: #{_lambda_.8} parent=0 // pred_fallthru
    _
  // Predicated region
  $region6: #{_lambda_.8} parent=0 // pred_check
    _
  $region7: #{_lambda_.8} parent=0 // pred_check_branch
    %12 = sbr.rel (0) target = $region9
  $region8: #{_lambda_.8} parent=0 // pred_region
    _
  $region9: #{_lambda_.8} parent=0 // pred_fallthru
    _
  // Predicated region
  $region10: #{_lambda_.8} parent=0 // pred_check
    _
  $region11: #{_lambda_.8} parent=0 // pred_check_branch
    %14 = sbr.rel (0) target = $region13
  $region12: #{_lambda_.8} parent=0 // pred_region
    _
  $region13: #{_lambda_.8} parent=0 // pred_fallthru
    _
  // Predicated region
  $region14: #{_lambda_.8} parent=0 // pred_check
    _
  $region15: #{_lambda_.8} parent=0 // pred_check_branch
    %16 = sbr.rel (0) target = $region17
  $region16: #{_lambda_.8} parent=0 // pred_region
    _
  $region17: #{_lambda_.8} parent=0 // pred_fallthru
    _
  %v18 = vld [vmem:[%s0] sm:$0xff]
  %v19 = vld [vmem:[%s0 + $0x8] sm:$0xff]
  %v20 = vld [vmem:[%s0 + $0x10] sm:$0xff]
  %v21 = vld [vmem:[%s0 + $0x18] sm:$0xff]
  %v22 = vld [vmem:[%s0 + $0x20] sm:$0xff]
  %v23 = vld [vmem:[%s0 + $0x28] sm:$0xff]
  %v24 = vld [vmem:[%s0 + $0x30] sm:$0xff]
  %v25 = vld [vmem:[%s0 + $0x38] sm:$0xff]
  %v26 = vld [vmem:[%s1] sm:$0xf]
  %v27 = vld [vmem:[%s1 + $0x4] sm:$0xf]
  %v28 = vld [vmem:[%s1 + $0x8] sm:$0xf]
  %v29 = vld [vmem:[%s1 + $0xc] sm:$0xf]
  %v30 = vld [vmem:[%s1 + $0x10] sm:$0xf]
  %v31 = vld [vmem:[%s1 + $0x14] sm:$0xf]
  %v32 = vld [vmem:[%s1 + $0x18] sm:$0xf]
  %v33 = vld [vmem:[%s1 + $0x1c] sm:$0xf]
  %v34 = vld [vmem:[%s1 + $0x20] sm:$0xf]
  %v35 = vld [vmem:[%s1 + $0x24] sm:$0xf]
  %v36 = vld [vmem:[%s1 + $0x28] sm:$0xf]
  %v37 = vld [vmem:[%s1 + $0x2c] sm:$0xf]
  %v38 = vld [vmem:[%s1 + $0x30] sm:$0xf]
  %v39 = vld [vmem:[%s1 + $0x34] sm:$0xf]
  %v40 = vld [vmem:[%s1 + $0x38] sm:$0xf]
  %v41 = vld [vmem:[%s1 + $0x3c] sm:$0xf]
  %v42 = vld [vmem:[%s1 + $0x40] sm:$0xf]
  %v43 = vld [vmem:[%s1 + $0x44] sm:$0xf]
  %v44 = vld [vmem:[%s1 + $0x48] sm:$0xf]
  %v45 = vld [vmem:[%s1 + $0x4c] sm:$0xf]
  %v46 = vld [vmem:[%s1 + $0x50] sm:$0xf]
  %v47 = vld [vmem:[%s1 + $0x54] sm:$0xf]
  %v48 = vld [vmem:[%s1 + $0x58] sm:$0xf]
  %v49 = vld [vmem:[%s1 + $0x5c] sm:$0xf]
  %v50 = vld [vmem:[%s1 + $0x60] sm:$0xf]
  %v51 = vld [vmem:[%s1 + $0x64] sm:$0xf]
  %v52 = vld [vmem:[%s1 + $0x68] sm:$0xf]
  %v53 = vld [vmem:[%s1 + $0x6c] sm:$0xf]
  %v54 = vld [vmem:[%s1 + $0x70] sm:$0xf]
  %v55 = vld [vmem:[%s1 + $0x74] sm:$0xf]
  %v56 = vld [vmem:[%s1 + $0x78] sm:$0xf]
  %v57 = vld [vmem:[%s1 + $0x7c] sm:$0xf]
  %v58 = vld [vmem:[%s1 + $0x80] sm:$0xf]
  %v59 = vld [vmem:[%s1 + $0x84] sm:$0xf]
  %v60 = vld [vmem:[%s1 + $0x88] sm:$0xf]
  %v61 = vld [vmem:[%s1 + $0x8c] sm:$0xf]
  %v62 = vld [vmem:[%s1 + $0x90] sm:$0xf]
  %v63 = vld [vmem:[%s1 + $0x94] sm:$0xf]
  %v64 = vld [vmem:[%s1 + $0x98] sm:$0xf]
  %v65 = vld [vmem:[%s1 + $0x9c] sm:$0xf]
  %v66 = vld [vmem:[%s1 + $0xa0] sm:$0xf]
  %v67 = vld [vmem:[%s1 + $0xa4] sm:$0xf]
  %v68 = vld [vmem:[%s1 + $0xa8] sm:$0xf]
  %v69 = vld [vmem:[%s1 + $0xac] sm:$0xf]
  %v70 = vld [vmem:[%s1 + $0xb0] sm:$0xf]
  %v71 = vld [vmem:[%s1 + $0xb4] sm:$0xf]
  %v72 = vld [vmem:[%s1 + $0xb8] sm:$0xf]
  %v73 = vld [vmem:[%s1 + $0xbc] sm:$0xf]
  %v74 = vld [vmem:[%s1 + $0xc0] sm:$0xf]
  %v75 = vld [vmem:[%s1 + $0xc4] sm:$0xf]
  %v76 = vld [vmem:[%s1 + $0xc8] sm:$0xf]
  %v77 = vld [vmem:[%s1 + $0xcc] sm:$0xf]
  %v78 = vld [vmem:[%s1 + $0xd0] sm:$0xf]
  %v79 = vld [vmem:[%s1 + $0xd4] sm:$0xf]
  %v80 = vld [vmem:[%s1 + $0xd8] sm:$0xf]
  %v81 = vld [vmem:[%s1 + $0xdc] sm:$0xf]
  %v82 = vld [vmem:[%s1 + $0xe0] sm:$0xf]
  %v83 = vld [vmem:[%s1 + $0xe4] sm:$0xf]
  %v84 = vld [vmem:[%s1 + $0xe8] sm:$0xf]
  %v85 = vld [vmem:[%s1 + $0xec] sm:$0xf]
  %v86 = vld [vmem:[%s1 + $0xf0] sm:$0xf]
  %v87 = vld [vmem:[%s1 + $0xf4] sm:$0xf]
  %v88 = vld [vmem:[%s1 + $0xf8] sm:$0xf]
  %v89 = vld [vmem:[%s1 + $0xfc] sm:$0xf]
  %v98 = vunpack.c.l.b16 %v18
  %v99 = vunpack.c.h.b16 %v18
  %v100 = vunpack.c.l.b16 %v19
  %v101 = vunpack.c.h.b16 %v19
  %v102 = vunpack.c.l.b16 %v20
  %v103 = vunpack.c.h.b16 %v20
  %v104 = vunpack.c.l.b16 %v21
  %v105 = vunpack.c.h.b16 %v21
  %v106 = vunpack.c.l.b16 %v22
  %v107 = vunpack.c.h.b16 %v22
  %v108 = vunpack.c.l.b16 %v23
  %v109 = vunpack.c.h.b16 %v23
  %v110 = vunpack.c.l.b16 %v24
  %v111 = vunpack.c.h.b16 %v24
  %v112 = vunpack.c.l.b16 %v25
  %v113 = vunpack.c.h.b16 %v25
  %v114 = vpack.c.b16 %v102, %v98
  %v115 = vpack.c.b16 %v103, %v99
  %v116 = vpack.c.b16 %v104, %v100
  %v117 = vpack.c.b16 %v105, %v101
  %v118 = vpack.c.b16 %v110, %v106
  %v119 = vpack.c.b16 %v111, %v107
  %v120 = vpack.c.b16 %v112, %v108
  %v121 = vpack.c.b16 %v113, %v109
  %v194 = vunpack.c.l.b16 %v26
  %v195 = vunpack.c.l.b16 %v27
  %v196 = vunpack.c.l.b16 %v28
  %v197 = vunpack.c.l.b16 %v29
  %v198 = vunpack.c.l.b16 %v30
  %v199 = vunpack.c.l.b16 %v31
  %v200 = vunpack.c.l.b16 %v32
  %v201 = vunpack.c.l.b16 %v33
  %v202 = vunpack.c.l.b16 %v34
  %v203 = vunpack.c.l.b16 %v35
  %v204 = vunpack.c.l.b16 %v36
  %v205 = vunpack.c.l.b16 %v37
  %v206 = vunpack.c.l.b16 %v38
  %v207 = vunpack.c.l.b16 %v39
  %v208 = vunpack.c.l.b16 %v40
  %v209 = vunpack.c.l.b16 %v41
  %v210 = vunpack.c.l.b16 %v42
  %v211 = vunpack.c.l.b16 %v43
  %v212 = vunpack.c.l.b16 %v44
  %v213 = vunpack.c.l.b16 %v45
  %v214 = vunpack.c.l.b16 %v46
  %v215 = vunpack.c.l.b16 %v47
  %v216 = vunpack.c.l.b16 %v48
  %v217 = vunpack.c.l.b16 %v49
  %v218 = vunpack.c.l.b16 %v50
  %v219 = vunpack.c.l.b16 %v51
  %v220 = vunpack.c.l.b16 %v52
  %v221 = vunpack.c.l.b16 %v53
  %v222 = vunpack.c.l.b16 %v54
  %v223 = vunpack.c.l.b16 %v55
  %v224 = vunpack.c.l.b16 %v56
  %v225 = vunpack.c.l.b16 %v57
  %v226 = vunpack.c.l.b16 %v58
  %v227 = vunpack.c.l.b16 %v59
  %v228 = vunpack.c.l.b16 %v60
  %v229 = vunpack.c.l.b16 %v61
  %v230 = vunpack.c.l.b16 %v62
  %v231 = vunpack.c.l.b16 %v63
  %v232 = vunpack.c.l.b16 %v64
  %v233 = vunpack.c.l.b16 %v65
  %v234 = vunpack.c.l.b16 %v66
  %v235 = vunpack.c.l.b16 %v67
  %v236 = vunpack.c.l.b16 %v68
  %v237 = vunpack.c.l.b16 %v69
  %v238 = vunpack.c.l.b16 %v70
  %v239 = vunpack.c.l.b16 %v71
  %v240 = vunpack.c.l.b16 %v72
  %v241 = vunpack.c.l.b16 %v73
  %v242 = vunpack.c.l.b16 %v74
  %v243 = vunpack.c.l.b16 %v75
  %v244 = vunpack.c.l.b16 %v76
  %v245 = vunpack.c.l.b16 %v77
  %v246 = vunpack.c.l.b16 %v78
  %v247 = vunpack.c.l.b16 %v79
  %v248 = vunpack.c.l.b16 %v80
  %v249 = vunpack.c.l.b16 %v81
  %v250 = vunpack.c.l.b16 %v82
  %v251 = vunpack.c.l.b16 %v83
  %v252 = vunpack.c.l.b16 %v84
  %v253 = vunpack.c.l.b16 %v85
  %v254 = vunpack.c.l.b16 %v86
  %v255 = vunpack.c.l.b16 %v87
  %v256 = vunpack.c.l.b16 %v88
  %v257 = vunpack.c.l.b16 %v89
  %v258 = vpack.c.b16 %v195, %v194
  %v259 = vpack.c.b16 %v197, %v196
  %v260 = vpack.c.b16 %v199, %v198
  %v261 = vpack.c.b16 %v201, %v200
  %v262 = vpack.c.b16 %v203, %v202
  %v263 = vpack.c.b16 %v205, %v204
  %v264 = vpack.c.b16 %v207, %v206
  %v265 = vpack.c.b16 %v209, %v208
  %v266 = vpack.c.b16 %v211, %v210
  %v267 = vpack.c.b16 %v213, %v212
  %v268 = vpack.c.b16 %v215, %v214
  %v269 = vpack.c.b16 %v217, %v216
  %v270 = vpack.c.b16 %v219, %v218
  %v271 = vpack.c.b16 %v221, %v220
  %v272 = vpack.c.b16 %v223, %v222
  %v273 = vpack.c.b16 %v225, %v224
  %v274 = vpack.c.b16 %v227, %v226
  %v275 = vpack.c.b16 %v229, %v228
  %v276 = vpack.c.b16 %v231, %v230
  %v277 = vpack.c.b16 %v233, %v232
  %v278 = vpack.c.b16 %v235, %v234
  %v279 = vpack.c.b16 %v237, %v236
  %v280 = vpack.c.b16 %v239, %v238
  %v281 = vpack.c.b16 %v241, %v240
  %v282 = vpack.c.b16 %v243, %v242
  %v283 = vpack.c.b16 %v245, %v244
  %v284 = vpack.c.b16 %v247, %v246
  %v285 = vpack.c.b16 %v249, %v248
  %v286 = vpack.c.b16 %v251, %v250
  %v287 = vpack.c.b16 %v253, %v252
  %v288 = vpack.c.b16 %v255, %v254
  %v289 = vpack.c.b16 %v257, %v256
  %322 = vmatprep.subr.bf16.mxu0 0
  %323 = vmatpush1.bf16.msra.mxu0 %v258
  %324 = vmatprep.subr.bf16.mxu0 0
  %325 = vmatpush1.bf16.msra.mxu0 %v259
  %326 = vmatprep.subr.bf16.mxu0 0
  %327 = vmatpush1.bf16.msra.mxu0 %v260
  %328 = vmatprep.subr.bf16.mxu0 0
  %329 = vmatpush1.bf16.msra.mxu0 %v261
  %330 = vmatprep.subr.bf16.mxu0 0
  %331 = vmatpush1.bf16.msra.mxu0 %v262
  %332 = vmatprep.subr.bf16.mxu0 0
  %333 = vmatpush1.bf16.msra.mxu0 %v263
  %334 = vmatprep.subr.bf16.mxu0 0
  %335 = vmatpush1.bf16.msra.mxu0 %v264
  %336 = vmatprep.subr.bf16.mxu0 0
  %337 = vmatpush1.bf16.msra.mxu0 %v265
  %338 = vmatprep.subr.bf16.mxu0 0
  %339 = vmatpush1.bf16.msra.mxu0 %v266
  %340 = vmatprep.subr.bf16.mxu0 0
  %341 = vmatpush1.bf16.msra.mxu0 %v267
  %342 = vmatprep.subr.bf16.mxu0 0
  %343 = vmatpush1.bf16.msra.mxu0 %v268
  %344 = vmatprep.subr.bf16.mxu0 0
  %345 = vmatpush1.bf16.msra.mxu0 %v269
  %346 = vmatprep.subr.bf16.mxu0 0
  %347 = vmatpush1.bf16.msra.mxu0 %v270
  %348 = vmatprep.subr.bf16.mxu0 0
  %349 = vmatpush1.bf16.msra.mxu0 %v271
  %350 = vmatprep.subr.bf16.mxu0 0
  %351 = vmatpush1.bf16.msra.mxu0 %v272
  %352 = vmatprep.subr.bf16.mxu0 0
  %353 = vmatpush1.bf16.msra.mxu0 %v273
  %354 = vmatprep.mubr.bf16.mxu0 %v115
  %355 = vmatmul.mubr.bf16.gmra.mrb[0].mxu0 %v114
  %v356 = vpop.f32.mrb[0].mxu0
  %v357 = vadd.f32 0.0, %v356
  %v358 = vpop.f32.mrb[0].mxu0
  %v359 = vpop.f32.mrb[0].mxu0
  %v360 = vadd.f32 0.0, %v359
  %v361 = vpop.f32.mrb[0].mxu0
  %362 = vmatprep.mubr.bf16.mxu0 %v119
  %363 = vmatmul.mubr.bf16.gmra.mrb[0].mxu0 %v118
  %v364 = vpop.f32.mrb[0].mxu0
  %v365 = vadd.f32 0.0, %v364
  %v366 = vpop.f32.mrb[0].mxu0
  %v367 = vpop.f32.mrb[0].mxu0
  %v368 = vadd.f32 0.0, %v367
  %v369 = vpop.f32.mrb[0].mxu0
  %370 = vdwg.mxu0
  %371 = vmatprep.subr.bf16.mxu0 0
  %372 = vmatpush1.bf16.msra.mxu0 %v274
  %373 = vmatprep.subr.bf16.mxu0 0
  %374 = vmatpush1.bf16.msra.mxu0 %v275
  %375 = vmatprep.subr.bf16.mxu0 0
  %376 = vmatpush1.bf16.msra.mxu0 %v276
  %377 = vmatprep.subr.bf16.mxu0 0
  %378 = vmatpush1.bf16.msra.mxu0 %v277
  %379 = vmatprep.subr.bf16.mxu0 0
  %380 = vmatpush1.bf16.msra.mxu0 %v278
  %381 = vmatprep.subr.bf16.mxu0 0
  %382 = vmatpush1.bf16.msra.mxu0 %v279
  %383 = vmatprep.subr.bf16.mxu0 0
  %384 = vmatpush1.bf16.msra.mxu0 %v280
  %385 = vmatprep.subr.bf16.mxu0 0
  %386 = vmatpush1.bf16.msra.mxu0 %v281
  %387 = vmatprep.subr.bf16.mxu0 0
  %388 = vmatpush1.bf16.msra.mxu0 %v282
  %389 = vmatprep.subr.bf16.mxu0 0
  %390 = vmatpush1.bf16.msra.mxu0 %v283
  %391 = vmatprep.subr.bf16.mxu0 0
  %392 = vmatpush1.bf16.msra.mxu0 %v284
  %393 = vmatprep.subr.bf16.mxu0 0
  %394 = vmatpush1.bf16.msra.mxu0 %v285
  %395 = vmatprep.subr.bf16.mxu0 0
  %396 = vmatpush1.bf16.msra.mxu0 %v286
  %397 = vmatprep.subr.bf16.mxu0 0
  %398 = vmatpush1.bf16.msra.mxu0 %v287
  %399 = vmatprep.subr.bf16.mxu0 0
  %400 = vmatpush1.bf16.msra.mxu0 %v288
  %401 = vmatprep.subr.bf16.mxu0 0
  %402 = vmatpush1.bf16.msra.mxu0 %v289
  %403 = vmatprep.mubr.bf16.mxu0 %v117
  %404 = vmatmul.mubr.bf16.gmra.mrb[0].mxu0 %v116
  %v405 = vpop.f32.mrb[0].mxu0
  %v406 = vadd.f32 %v357, %v405
  %v407 = vpop.f32.mrb[0].mxu0
  %v408 = vpop.f32.mrb[0].mxu0
  %v409 = vadd.f32 %v360, %v408
  %v410 = vpop.f32.mrb[0].mxu0
  %411 = vmatprep.mubr.bf16.mxu0 %v121
  %412 = vmatmul.mubr.bf16.gmra.mrb[0].mxu0 %v120
  %v413 = vpop.f32.mrb[0].mxu0
  %v414 = vadd.f32 %v365, %v413
  %v415 = vpop.f32.mrb[0].mxu0
  %v416 = vpop.f32.mrb[0].mxu0
  %v417 = vadd.f32 %v368, %v416
  %v418 = vpop.f32.mrb[0].mxu0
  %419 = vdwg.mxu0
  %v420 = vadd.f32 %v406, %v409
  %v421 = vadd.f32 %v420, %v414
  %v422 = vadd.f32 %v421, %v417
  %v423 = vrot.slane %v422, 4
  %v424 = vadd.f32 %v422, %v423
  %v425 = vrot.slane %v424, 2
  %v426 = vadd.f32 %v424, %v425
  %v427 = vrot.slane %v426, 1
  %v428 = vadd.f32 %v426, %v427
  %v429 = vmul.f32 %v406, %v406
  %v430 = vmul.f32 %v409, %v409
  %v431 = vmul.f32 %v414, %v414
  %v432 = vmul.f32 %v417, %v417
  %v433 = vadd.f32 %v429, %v430
  %v434 = vadd.f32 %v433, %v431
  %v435 = vadd.f32 %v434, %v432
  %v436 = vrot.slane %v435, 4
  %v437 = vadd.f32 %v435, %v436
  %v438 = vrot.slane %v437, 2
  %v439 = vadd.f32 %v437, %v438
  %v440 = vrot.slane %v439, 1
  %v441 = vadd.f32 %v439, %v440
  %v442 = vmul.f32 %v428, 0.03125
  %v443 = vmul.f32 %v441, 0.03125
  %v444 = vmul.f32 %v442, %v442
  %v445 = vsub.f32 %v443, %v444
  %v446 = vmax.f32 %v445, 0.0
  %v447 = vld [vmem:[%s2] sm:$0x1]
  %v448 = vadd.f32 %v446, 1e-05
  %v449 = vrsqrt.pop %v448
  %v450 = vmul.f32 %v447, %v449
  %v451 = vld [vmem:[%s3] sm:$0x1]
  %v452 = vmul.f32 %v442, %v450
  %v453 = vsub.f32 %v451, %v452
  %v455 = vlaneseq
  %v456 = vshrl.u32 %v455, 7
  %v457 = vsub.s32 0, %v456
  %v458 = vrot.slane %v450, %v457
  %v460 = vmul.f32 %v406, %v458
  %v461 = vmul.f32 %v409, %v458
  %v462 = vmul.f32 %v414, %v458
  %v463 = vmul.f32 %v417, %v458
  %v465 = vlaneseq
  %v466 = vshrl.u32 %v465, 7
  %v467 = vsub.s32 0, %v466
  %v468 = vrot.slane %v453, %v467
  %v470 = vadd.f32 %v460, %v468
  %v471 = vadd.f32 %v461, %v468
  %v472 = vadd.f32 %v462, %v468
  %v473 = vadd.f32 %v463, %v468
  %v474 = vmul.f32 %v470, 0.2
  %v475 = vmul.f32 %v471, 0.2
  %v476 = vmul.f32 %v472, 0.2
  %v477 = vmul.f32 %v473, 0.2
  %v478 = vmax.f32 %v470, %v474
  %v479 = vmax.f32 %v471, %v475
  %v480 = vmax.f32 %v472, %v476
  %v481 = vmax.f32 %v473, %v477
  %v482 = vpack.c.bf16 %v479, %v478
  %v483 = vpack.c.bf16 %v481, %v480
  %v486 = vunpack.c.l.b16 %v482
  %v487 = vunpack.c.h.b16 %v482
  %v488 = vunpack.c.l.b16 %v483
  %v489 = vunpack.c.h.b16 %v483
  %v490 = vpack.c.b16 %v486, %v486
  %v491 = vpack.c.b16 %v487, %v487
  %v492 = vpack.c.b16 %v488, %v488
  %v493 = vpack.c.b16 %v489, %v489
  %498 = vst [vmem:[%s4] sm:$0xf] %v490
  %499 = vst [vmem:[%s4 + $0x4] sm:$0xf] %v491
  %500 = vst [vmem:[%s4 + $0x8] sm:$0xf] %v492
  %501 = vst [vmem:[%s4 + $0xc] sm:$0xf] %v493
  // Predicated region
  $region18: #{_lambda_.8} parent=0 // pred_check
    _
  $region19: #{_lambda_.8} parent=0 // pred_check_branch
    %503 = sbr.rel (0) target = $region21
  $region20: #{_lambda_.8} parent=0 // pred_region
    _
  $region21: #{_lambda_.8} parent=0 // pred_fallthru
    _
  // Predicated region
  $region22: #{_lambda_.8} parent=0 // pred_check
    _
  $region23: #{_lambda_.8} parent=0 // pred_check_branch
    %505 = sbr.rel (0) target = $region25
  $region24: #{_lambda_.8} parent=0 // pred_region
    _
  $region25: #{_lambda_.8} parent=0 // pred_fallthru
    _

// kernel: _lambda_.9
$region0: #{_lambda_.9}
  #allocation0 [shape = 'u32[]', space=smem, size = 0x4, offset = 0x4, fixed_abs, tag = 'smem constant byte address 0x4 - core index']
  #allocation1 [shape = 'u32[144,128]{1,0:T(1,128)}', space=vmem, size = 0x12000, scoped, tag = 'internal scratch']
  %s0 = inlined_call_operand.vmem [shape: bf16[64,1024], index: 0, kind: input, shape index: {}]
  %s1 = inlined_call_operand.vmem [shape: bf16[1024,128], index: 1, kind: input, shape index: {}]
  %s2 = inlined_call_operand.vmem [shape: f32[1,128], index: 2, kind: input, shape index: {}]
  %s3 = inlined_call_operand.vmem [shape: f32[64,128], index: 3, kind: output, shape index: {}]
  %s4 = sld [smem:[#allocation0]]
  $region22: #{_lambda_.9} parent=0
    _
  %s6 = ssub.s32 1, %s4
  %s7 = scalar_select 0, %s6, %s4
  // Predicated region
  $region2: #{_lambda_.9} parent=0 // pred_check
    _
  $region3: #{_lambda_.9} parent=0 // pred_check_branch
    %9 = sbr.rel (0) target = $region5
  $region4: #{_lambda_.9} parent=0 // pred_region
    _
  $region5: #{_lambda_.9} parent=0 // pred_fallthru
    _
  // Predicated region
  $region6: #{_lambda_.9} parent=0 // pred_check
    _
  $region7: #{_lambda_.9} parent=0 // pred_check_branch
    %11 = sbr.rel (0) target = $region9
  $region8: #{_lambda_.9} parent=0 // pred_region
    _
  $region9: #{_lambda_.9} parent=0 // pred_fallthru
    _
  // Predicated region
  $region10: #{_lambda_.9} parent=0 // pred_check
    _
  $region11: #{_lambda_.9} parent=0 // pred_check_branch
    %13 = sbr.rel (0) target = $region13
  $region12: #{_lambda_.9} parent=0 // pred_region
    _
  $region13: #{_lambda_.9} parent=0 // pred_fallthru
    _
  %v15 = vld [vmem:[%s0] sm:$0xff]
  %v16 = vld [vmem:[%s0 + $0x8] sm:$0xff]
  %v17 = vld [vmem:[%s0 + $0x10] sm:$0xff]
  %v18 = vld [vmem:[%s0 + $0x18] sm:$0xff]
  %v19 = vld [vmem:[%s0 + $0x20] sm:$0xff]
  %v20 = vld [vmem:[%s0 + $0x28] sm:$0xff]
  %v21 = vld [vmem:[%s0 + $0x30] sm:$0xff]
  %v22 = vld [vmem:[%s0 + $0x38] sm:$0xff]
  %v23 = vld [vmem:[%s0 + $0x40] sm:$0xff]
  %v24 = vld [vmem:[%s0 + $0x48] sm:$0xff]
  %v25 = vld [vmem:[%s0 + $0x50] sm:$0xff]
  %v26 = vld [vmem:[%s0 + $0x58] sm:$0xff]
  %v27 = vld [vmem:[%s0 + $0x60] sm:$0xff]
  %v28 = vld [vmem:[%s0 + $0x68] sm:$0xff]
  %v29 = vld [vmem:[%s0 + $0x70] sm:$0xff]
  %v30 = vld [vmem:[%s0 + $0x78] sm:$0xff]
  %v31 = vld [vmem:[%s0 + $0x80] sm:$0xff]
  %v32 = vld [vmem:[%s0 + $0x88] sm:$0xff]
  %v33 = vld [vmem:[%s0 + $0x90] sm:$0xff]
  %v34 = vld [vmem:[%s0 + $0x98] sm:$0xff]
  %v35 = vld [vmem:[%s0 + $0xa0] sm:$0xff]
  %v36 = vld [vmem:[%s0 + $0xa8] sm:$0xff]
  %v37 = vld [vmem:[%s0 + $0xb0] sm:$0xff]
  %v38 = vld [vmem:[%s0 + $0xb8] sm:$0xff]
  %v39 = vld [vmem:[%s0 + $0xc0] sm:$0xff]
  %v40 = vld [vmem:[%s0 + $0xc8] sm:$0xff]
  %v41 = vld [vmem:[%s0 + $0xd0] sm:$0xff]
  %v42 = vld [vmem:[%s0 + $0xd8] sm:$0xff]
  %v43 = vld [vmem:[%s0 + $0xe0] sm:$0xff]
  %v44 = vld [vmem:[%s0 + $0xe8] sm:$0xff]
  %v45 = vld [vmem:[%s0 + $0xf0] sm:$0xff]
  %v46 = vld [vmem:[%s0 + $0xf8] sm:$0xff]
  %v47 = vld [vmem:[%s1] sm:$0xf]
  %v48 = vld [vmem:[%s1 + $0x4] sm:$0xf]
  %v49 = vld [vmem:[%s1 + $0x8] sm:$0xf]
  %v50 = vld [vmem:[%s1 + $0xc] sm:$0xf]
  %v51 = vld [vmem:[%s1 + $0x10] sm:$0xf]
  %v52 = vld [vmem:[%s1 + $0x14] sm:$0xf]
  %v53 = vld [vmem:[%s1 + $0x18] sm:$0xf]
  %v54 = vld [vmem:[%s1 + $0x1c] sm:$0xf]
  %v55 = vld [vmem:[%s1 + $0x20] sm:$0xf]
  %v56 = vld [vmem:[%s1 + $0x24] sm:$0xf]
  %v57 = vld [vmem:[%s1 + $0x28] sm:$0xf]
  %v58 = vld [vmem:[%s1 + $0x2c] sm:$0xf]
  %v59 = vld [vmem:[%s1 + $0x30] sm:$0xf]
  %v60 = vld [vmem:[%s1 + $0x34] sm:$0xf]
  %v61 = vld [vmem:[%s1 + $0x38] sm:$0xf]
  %v62 = vld [vmem:[%s1 + $0x3c] sm:$0xf]
  %v63 = vld [vmem:[%s1 + $0x40] sm:$0xf]
  %v64 = vld [vmem:[%s1 + $0x44] sm:$0xf]
  %v65 = vld [vmem:[%s1 + $0x48] sm:$0xf]
  %v66 = vld [vmem:[%s1 + $0x4c] sm:$0xf]
  %v67 = vld [vmem:[%s1 + $0x50] sm:$0xf]
  %v68 = vld [vmem:[%s1 + $0x54] sm:$0xf]
  %v69 = vld [vmem:[%s1 + $0x58] sm:$0xf]
  %v70 = vld [vmem:[%s1 + $0x5c] sm:$0xf]
  %v71 = vld [vmem:[%s1 + $0x60] sm:$0xf]
  %v72 = vld [vmem:[%s1 + $0x64] sm:$0xf]
  %v73 = vld [vmem:[%s1 + $0x68] sm:$0xf]
  %v74 = vld [vmem:[%s1 + $0x6c] sm:$0xf]
  %v75 = vld [vmem:[%s1 + $0x70] sm:$0xf]
  %v76 = vld [vmem:[%s1 + $0x74] sm:$0xf]
  %v77 = vld [vmem:[%s1 + $0x78] sm:$0xf]
  %v78 = vld [vmem:[%s1 + $0x7c] sm:$0xf]
  %v79 = vld [vmem:[%s1 + $0x80] sm:$0xf]
  %v80 = vld [vmem:[%s1 + $0x84] sm:$0xf]
  %v81 = vld [vmem:[%s1 + $0x88] sm:$0xf]
  %v82 = vld [vmem:[%s1 + $0x8c] sm:$0xf]
  %v83 = vld [vmem:[%s1 + $0x90] sm:$0xf]
  %v84 = vld [vmem:[%s1 + $0x94] sm:$0xf]
  %v85 = vld [vmem:[%s1 + $0x98] sm:$0xf]
  %v86 = vld [vmem:[%s1 + $0x9c] sm:$0xf]
  %v87 = vld [vmem:[%s1 + $0xa0] sm:$0xf]
  %v88 = vld [vmem:[%s1 + $0xa4] sm:$0xf]
  %v89 = vld [vmem:[%s1 + $0xa8] sm:$0xf]
  %v90 = vld [vmem:[%s1 + $0xac] sm:$0xf]
  %v91 = vld [vmem:[%s1 + $0xb0] sm:$0xf]
  %v92 = vld [vmem:[%s1 + $0xb4] sm:$0xf]
  %v93 = vld [vmem:[%s1 + $0xb8] sm:$0xf]
  %v94 = vld [vmem:[%s1 + $0xbc] sm:$0xf]
  %v95 = vld [vmem:[%s1 + $0xc0] sm:$0xf]
  %v96 = vld [vmem:[%s1 + $0xc4] sm:$0xf]
  %v97 = vld [vmem:[%s1 + $0xc8] sm:$0xf]
  %v98 = vld [vmem:[%s1 + $0xcc] sm:$0xf]
  %v99 = vld [vmem:[%s1 + $0xd0] sm:$0xf]
  %v100 = vld [vmem:[%s1 + $0xd4] sm:$0xf]
  %v101 = vld [vmem:[%s1 + $0xd8] sm:$0xf]
  %v102 = vld [vmem:[%s1 + $0xdc] sm:$0xf]
  %v103 = vld [vmem:[%s1 + $0xe0] sm:$0xf]
  %v104 = vld [vmem:[%s1 + $0xe4] sm:$0xf]
  %v105 = vld [vmem:[%s1 + $0xe8] sm:$0xf]
  %v106 = vld [vmem:[%s1 + $0xec] sm:$0xf]
  %v107 = vld [vmem:[%s1 + $0xf0] sm:$0xf]
  %v108 = vld [vmem:[%s1 + $0xf4] sm:$0xf]
  %v109 = vld [vmem:[%s1 + $0xf8] sm:$0xf]
  %v110 = vld [vmem:[%s1 + $0xfc] sm:$0xf]
  %v111 = vld [vmem:[%s1 + $0x100] sm:$0xf]
  %v112 = vld [vmem:[%s1 + $0x104] sm:$0xf]
  %v113 = vld [vmem:[%s1 + $0x108] sm:$0xf]
  %v114 = vld [vmem:[%s1 + $0x10c] sm:$0xf]
  %v115 = vld [vmem:[%s1 + $0x110] sm:$0xf]
  %v116 = vld [vmem:[%s1 + $0x114] sm:$0xf]
  %v117 = vld [vmem:[%s1 + $0x118] sm:$0xf]
  %v118 = vld [vmem:[%s1 + $0x11c] sm:$0xf]
  %v119 = vld [vmem:[%s1 + $0x120] sm:$0xf]
  %v120 = vld [vmem:[%s1 + $0x124] sm:$0xf]
  %v121 = vld [vmem:[%s1 + $0x128] sm:$0xf]
  %v122 = vld [vmem:[%s1 + $0x12c] sm:$0xf]
  %v123 = vld [vmem:[%s1 + $0x130] sm:$0xf]
  %v124 = vld [vmem:[%s1 + $0x134] sm:$0xf]
  %v125 = vld [vmem:[%s1 + $0x138] sm:$0xf]
  %v126 = vld [vmem:[%s1 + $0x13c] sm:$0xf]
  %v127 = vld [vmem:[%s1 + $0x140] sm:$0xf]
  %v128 = vld [vmem:[%s1 + $0x144] sm:$0xf]
  %v129 = vld [vmem:[%s1 + $0x148] sm:$0xf]
  %v130 = vld [vmem:[%s1 + $0x14c] sm:$0xf]
  %v131 = vld [vmem:[%s1 + $0x150] sm:$0xf]
  %v132 = vld [vmem:[%s1 + $0x154] sm:$0xf]
  %v133 = vld [vmem:[%s1 + $0x158] sm:$0xf]
  %v134 = vld [vmem:[%s1 + $0x15c] sm:$0xf]
  %v135 = vld [vmem:[%s1 + $0x160] sm:$0xf]
  %v136 = vld [vmem:[%s1 + $0x164] sm:$0xf]
  %v137 = vld [vmem:[%s1 + $0x168] sm:$0xf]
  %v138 = vld [vmem:[%s1 + $0x16c] sm:$0xf]
  %v139 = vld [vmem:[%s1 + $0x170] sm:$0xf]
  %v140 = vld [vmem:[%s1 + $0x174] sm:$0xf]
  %v141 = vld [vmem:[%s1 + $0x178] sm:$0xf]
  %v142 = vld [vmem:[%s1 + $0x17c] sm:$0xf]
  %v143 = vld [vmem:[%s1 + $0x180] sm:$0xf]
  %v144 = vld [vmem:[%s1 + $0x184] sm:$0xf]
  %v145 = vld [vmem:[%s1 + $0x188] sm:$0xf]
  %v146 = vld [vmem:[%s1 + $0x18c] sm:$0xf]
  %v147 = vld [vmem:[%s1 + $0x190] sm:$0xf]
  %v148 = vld [vmem:[%s1 + $0x194] sm:$0xf]
  %v149 = vld [vmem:[%s1 + $0x198] sm:$0xf]
  %v150 = vld [vmem:[%s1 + $0x19c] sm:$0xf]
  %v151 = vld [vmem:[%s1 + $0x1a0] sm:$0xf]
  %v152 = vld [vmem:[%s1 + $0x1a4] sm:$0xf]
  %v153 = vld [vmem:[%s1 + $0x1a8] sm:$0xf]
  %v154 = vld [vmem:[%s1 + $0x1ac] sm:$0xf]
  %v155 = vld [vmem:[%s1 + $0x1b0] sm:$0xf]
  %v156 = vld [vmem:[%s1 + $0x1b4] sm:$0xf]
  %v157 = vld [vmem:[%s1 + $0x1b8] sm:$0xf]
  %v158 = vld [vmem:[%s1 + $0x1bc] sm:$0xf]
  %v159 = vld [vmem:[%s1 + $0x1c0] sm:$0xf]
  %v160 = vld [vmem:[%s1 + $0x1c4] sm:$0xf]
  %v161 = vld [vmem:[%s1 + $0x1c8] sm:$0xf]
  %v162 = vld [vmem:[%s1 + $0x1cc] sm:$0xf]
  %v163 = vld [vmem:[%s1 + $0x1d0] sm:$0xf]
  %v164 = vld [vmem:[%s1 + $0x1d4] sm:$0xf]
  %v165 = vld [vmem:[%s1 + $0x1d8] sm:$0xf]
  %v166 = vld [vmem:[%s1 + $0x1dc] sm:$0xf]
  %v167 = vld [vmem:[%s1 + $0x1e0] sm:$0xf]
  %v168 = vld [vmem:[%s1 + $0x1e4] sm:$0xf]
  %v169 = vld [vmem:[%s1 + $0x1e8] sm:$0xf]
  %v170 = vld [vmem:[%s1 + $0x1ec] sm:$0xf]
  %v171 = vld [vmem:[%s1 + $0x1f0] sm:$0xf]
  %v172 = vld [vmem:[%s1 + $0x1f4] sm:$0xf]
  %v173 = vld [vmem:[%s1 + $0x1f8] sm:$0xf]
  %v174 = vld [vmem:[%s1 + $0x1fc] sm:$0xf]
  %v175 = vld [vmem:[%s2] sm:$0x1]
  %v177 = vlaneseq
  %v178 = vshrl.u32 %v177, 7
  %v179 = vsub.s32 0, %v178
  %v180 = vrot.slane %v175, %v179
  %v214 = vunpack.c.l.b16 %v15
  %v215 = vunpack.c.h.b16 %v15
  %v216 = vunpack.c.l.b16 %v16
  %v217 = vunpack.c.h.b16 %v16
  %v218 = vunpack.c.l.b16 %v17
  %v219 = vunpack.c.h.b16 %v17
  %v220 = vunpack.c.l.b16 %v18
  %v221 = vunpack.c.h.b16 %v18
  %v222 = vunpack.c.l.b16 %v19
  %v223 = vunpack.c.h.b16 %v19
  %v224 = vunpack.c.l.b16 %v20
  %v225 = vunpack.c.h.b16 %v20
  %v226 = vunpack.c.l.b16 %v21
  %v227 = vunpack.c.h.b16 %v21
  %v228 = vunpack.c.l.b16 %v22
  %v229 = vunpack.c.h.b16 %v22
  %v230 = vunpack.c.l.b16 %v23
  %v231 = vunpack.c.h.b16 %v23
  %v232 = vunpack.c.l.b16 %v24
  %v233 = vunpack.c.h.b16 %v24
  %v234 = vunpack.c.l.b16 %v25
  %v235 = vunpack.c.h.b16 %v25
  %v236 = vunpack.c.l.b16 %v26
  %v237 = vunpack.c.h.b16 %v26
  %v238 = vunpack.c.l.b16 %v27
  %v239 = vunpack.c.h.b16 %v27
  %v240 = vunpack.c.l.b16 %v28
  %v241 = vunpack.c.h.b16 %v28
  %v242 = vunpack.c.l.b16 %v29
  %v243 = vunpack.c.h.b16 %v29
  %v244 = vunpack.c.l.b16 %v30
  %v245 = vunpack.c.h.b16 %v30
  %v246 = vunpack.c.l.b16 %v31
  %v247 = vunpack.c.h.b16 %v31
  %v248 = vunpack.c.l.b16 %v32
  %v249 = vunpack.c.h.b16 %v32
  %v250 = vunpack.c.l.b16 %v33
  %v251 = vunpack.c.h.b16 %v33
  %v252 = vunpack.c.l.b16 %v34
  %v253 = vunpack.c.h.b16 %v34
  %v254 = vunpack.c.l.b16 %v35
  %v255 = vunpack.c.h.b16 %v35
  %v256 = vunpack.c.l.b16 %v36
  %v257 = vunpack.c.h.b16 %v36
  %v258 = vunpack.c.l.b16 %v37
  %v259 = vunpack.c.h.b16 %v37
  %v260 = vunpack.c.l.b16 %v38
  %v261 = vunpack.c.h.b16 %v38
  %v262 = vunpack.c.l.b16 %v39
  %v263 = vunpack.c.h.b16 %v39
  %v264 = vunpack.c.l.b16 %v40
  %v265 = vunpack.c.h.b16 %v40
  %v266 = vunpack.c.l.b16 %v41
  %v267 = vunpack.c.h.b16 %v41
  %v268 = vunpack.c.l.b16 %v42
  %v269 = vunpack.c.h.b16 %v42
  %v270 = vunpack.c.l.b16 %v43
  %v271 = vunpack.c.h.b16 %v43
  %v272 = vunpack.c.l.b16 %v44
  %v273 = vunpack.c.h.b16 %v44
  %v274 = vunpack.c.l.b16 %v45
  %v275 = vunpack.c.h.b16 %v45
  %v276 = vunpack.c.l.b16 %v46
  %v277 = vunpack.c.h.b16 %v46
  %v278 = vpack.c.b16 %v222, %v214
  %v279 = vpack.c.b16 %v223, %v215
  %v280 = vpack.c.b16 %v224, %v216
  %v281 = vpack.c.b16 %v225, %v217
  %v282 = vpack.c.b16 %v226, %v218
  %v283 = vpack.c.b16 %v227, %v219
  %v284 = vpack.c.b16 %v228, %v220
  %v285 = vpack.c.b16 %v229, %v221
  %v286 = vpack.c.b16 %v238, %v230
  %v287 = vpack.c.b16 %v239, %v231
  %v288 = vpack.c.b16 %v240, %v232
  %v289 = vpack.c.b16 %v241, %v233
  %v290 = vpack.c.b16 %v242, %v234
  %v291 = vpack.c.b16 %v243, %v235
  %v292 = vpack.c.b16 %v244, %v236
  %v293 = vpack.c.b16 %v245, %v237
  %v294 = vpack.c.b16 %v254, %v246
  %v295 = vpack.c.b16 %v255, %v247
  %v296 = vpack.c.b16 %v256, %v248
  %v297 = vpack.c.b16 %v257, %v249
  %v298 = vpack.c.b16 %v258, %v250
  %v299 = vpack.c.b16 %v259, %v251
  %v300 = vpack.c.b16 %v260, %v252
  %v301 = vpack.c.b16 %v261, %v253
  %v302 = vpack.c.b16 %v270, %v262
  %v303 = vpack.c.b16 %v271, %v263
  %v304 = vpack.c.b16 %v272, %v264
  %v305 = vpack.c.b16 %v273, %v265
  %v306 = vpack.c.b16 %v274, %v266
  %v307 = vpack.c.b16 %v275, %v267
  %v308 = vpack.c.b16 %v276, %v268
  %v309 = vpack.c.b16 %v277, %v269
  %v470 = vunpack.c.l.b16 %v47
  %v471 = vunpack.c.l.b16 %v48
  %v472 = vunpack.c.l.b16 %v49
  %v473 = vunpack.c.l.b16 %v50
  %v474 = vunpack.c.l.b16 %v51
  %v475 = vunpack.c.l.b16 %v52
  %v476 = vunpack.c.l.b16 %v53
  %v477 = vunpack.c.l.b16 %v54
  %v478 = vunpack.c.l.b16 %v55
  %v479 = vunpack.c.l.b16 %v56
  %v480 = vunpack.c.l.b16 %v57
  %v481 = vunpack.c.l.b16 %v58
  %v482 = vunpack.c.l.b16 %v59
  %v483 = vunpack.c.l.b16 %v60
  %v484 = vunpack.c.l.b16 %v61
  %v485 = vunpack.c.l.b16 %v62
  %v486 = vunpack.c.l.b16 %v63
  %v487 = vunpack.c.l.b16 %v64
  %v488 = vunpack.c.l.b16 %v65
  %v489 = vunpack.c.l.b16 %v66
  %v490 = vunpack.c.l.b16 %v67
  %v491 = vunpack.c.l.b16 %v68
  %v492 = vunpack.c.l.b16 %v69
  %v493 = vunpack.c.l.b16 %v70
  %v494 = vunpack.c.l.b16 %v71
  %v495 = vunpack.c.l.b16 %v72
  %v496 = vunpack.c.l.b16 %v73
  %v497 = vunpack.c.l.b16 %v74
  %v498 = vunpack.c.l.b16 %v75
  %v499 = vunpack.c.l.b16 %v76
  %v500 = vunpack.c.l.b16 %v77
  %v501 = vunpack.c.l.b16 %v78
  %v502 = vunpack.c.l.b16 %v79
  %v503 = vunpack.c.l.b16 %v80
  %v504 = vunpack.c.l.b16 %v81
  %v505 = vunpack.c.l.b16 %v82
  %v506 = vunpack.c.l.b16 %v83
  %v507 = vunpack.c.l.b16 %v84
  %v508 = vunpack.c.l.b16 %v85
  %v509 = vunpack.c.l.b16 %v86
  %v510 = vunpack.c.l.b16 %v87
  %v511 = vunpack.c.l.b16 %v88
  %v512 = vunpack.c.l.b16 %v89
  %v513 = vunpack.c.l.b16 %v90
  %v514 = vunpack.c.l.b16 %v91
  %v515 = vunpack.c.l.b16 %v92
  %v516 = vunpack.c.l.b16 %v93
  %v517 = vunpack.c.l.b16 %v94
  %v518 = vunpack.c.l.b16 %v95
  %v519 = vunpack.c.l.b16 %v96
  %v520 = vunpack.c.l.b16 %v97
  %v521 = vunpack.c.l.b16 %v98
  %v522 = vunpack.c.l.b16 %v99
  %v523 = vunpack.c.l.b16 %v100
  %v524 = vunpack.c.l.b16 %v101
  %v525 = vunpack.c.l.b16 %v102
  %v526 = vunpack.c.l.b16 %v103
  %v527 = vunpack.c.l.b16 %v104
  %v528 = vunpack.c.l.b16 %v105
  %v529 = vunpack.c.l.b16 %v106
  %v530 = vunpack.c.l.b16 %v107
  %v531 = vunpack.c.l.b16 %v108
  %v532 = vunpack.c.l.b16 %v109
  %v533 = vunpack.c.l.b16 %v110
  %v534 = vunpack.c.l.b16 %v111
  %v535 = vunpack.c.l.b16 %v112
  %v536 = vunpack.c.l.b16 %v113
  %v537 = vunpack.c.l.b16 %v114
  %v538 = vunpack.c.l.b16 %v115
  %v539 = vunpack.c.l.b16 %v116
  %v540 = vunpack.c.l.b16 %v117
  %v541 = vunpack.c.l.b16 %v118
  %v542 = vunpack.c.l.b16 %v119
  %v543 = vunpack.c.l.b16 %v120
  %v544 = vunpack.c.l.b16 %v121
  %v545 = vunpack.c.l.b16 %v122
  %v546 = vunpack.c.l.b16 %v123
  %v547 = vunpack.c.l.b16 %v124
  %v548 = vunpack.c.l.b16 %v125
  %v549 = vunpack.c.l.b16 %v126
  %v550 = vunpack.c.l.b16 %v127
  %v551 = vunpack.c.l.b16 %v128
  %v552 = vunpack.c.l.b16 %v129
  %v553 = vunpack.c.l.b16 %v130
  %v554 = vunpack.c.l.b16 %v131
  %v555 = vunpack.c.l.b16 %v132
  %v556 = vunpack.c.l.b16 %v133
  %v557 = vunpack.c.l.b16 %v134
  %v558 = vunpack.c.l.b16 %v135
  %v559 = vunpack.c.l.b16 %v136
  %v560 = vunpack.c.l.b16 %v137
  %v561 = vunpack.c.l.b16 %v138
  %v562 = vunpack.c.l.b16 %v139
  %v563 = vunpack.c.l.b16 %v140
  %v564 = vunpack.c.l.b16 %v141
  %v565 = vunpack.c.l.b16 %v142
  %v566 = vunpack.c.l.b16 %v143
  %v567 = vunpack.c.l.b16 %v144
  %v568 = vunpack.c.l.b16 %v145
  %v569 = vunpack.c.l.b16 %v146
  %v570 = vunpack.c.l.b16 %v147
  %v571 = vunpack.c.l.b16 %v148
  %v572 = vunpack.c.l.b16 %v149
  %v573 = vunpack.c.l.b16 %v150
  %v574 = vunpack.c.l.b16 %v151
  %v575 = vunpack.c.l.b16 %v152
  %v576 = vunpack.c.l.b16 %v153
  %v577 = vunpack.c.l.b16 %v154
  %v578 = vunpack.c.l.b16 %v155
  %v579 = vunpack.c.l.b16 %v156
  %v580 = vunpack.c.l.b16 %v157
  %v581 = vunpack.c.l.b16 %v158
  %v582 = vunpack.c.l.b16 %v159
  %v583 = vunpack.c.l.b16 %v160
  %v584 = vunpack.c.l.b16 %v161
  %v585 = vunpack.c.l.b16 %v162
  %v586 = vunpack.c.l.b16 %v163
  %v587 = vunpack.c.l.b16 %v164
  %v588 = vunpack.c.l.b16 %v165
  %v589 = vunpack.c.l.b16 %v166
  %v590 = vunpack.c.l.b16 %v167
  %v591 = vunpack.c.l.b16 %v168
  %v592 = vunpack.c.l.b16 %v169
  %v593 = vunpack.c.l.b16 %v170
  %v594 = vunpack.c.l.b16 %v171
  %v595 = vunpack.c.l.b16 %v172
  %v596 = vunpack.c.l.b16 %v173
  %v597 = vunpack.c.l.b16 %v174
  %v598 = vpack.c.b16 %v471, %v470
  %v599 = vpack.c.b16 %v473, %v472
  %v600 = vpack.c.b16 %v475, %v474
  %v601 = vpack.c.b16 %v477, %v476
  %v602 = vpack.c.b16 %v479, %v478
  %v603 = vpack.c.b16 %v481, %v480
  %v604 = vpack.c.b16 %v483, %v482
  %v605 = vpack.c.b16 %v485, %v484
  %v606 = vpack.c.b16 %v487, %v486
  %v607 = vpack.c.b16 %v489, %v488
  %v608 = vpack.c.b16 %v491, %v490
  %v609 = vpack.c.b16 %v493, %v492
  %v610 = vpack.c.b16 %v495, %v494
  %v611 = vpack.c.b16 %v497, %v496
  %v612 = vpack.c.b16 %v499, %v498
  %v613 = vpack.c.b16 %v501, %v500
  %v614 = vpack.c.b16 %v503, %v502
  %v615 = vpack.c.b16 %v505, %v504
  %v616 = vpack.c.b16 %v507, %v506
  %v617 = vpack.c.b16 %v509, %v508
  %v618 = vpack.c.b16 %v511, %v510
  %v619 = vpack.c.b16 %v513, %v512
  %v620 = vpack.c.b16 %v515, %v514
  %v621 = vpack.c.b16 %v517, %v516
  %v622 = vpack.c.b16 %v519, %v518
  %v623 = vpack.c.b16 %v521, %v520
  %v624 = vpack.c.b16 %v523, %v522
  %v625 = vpack.c.b16 %v525, %v524
  %v626 = vpack.c.b16 %v527, %v526
  %v627 = vpack.c.b16 %v529, %v528
  %v628 = vpack.c.b16 %v531, %v530
  %v629 = vpack.c.b16 %v533, %v532
  %v630 = vpack.c.b16 %v535, %v534
  %v631 = vpack.c.b16 %v537, %v536
  %v632 = vpack.c.b16 %v539, %v538
  %v633 = vpack.c.b16 %v541, %v540
  %v634 = vpack.c.b16 %v543, %v542
  %v635 = vpack.c.b16 %v545, %v544
  %v636 = vpack.c.b16 %v547, %v546
  %v637 = vpack.c.b16 %v549, %v548
  %v638 = vpack.c.b16 %v551, %v550
  %v639 = vpack.c.b16 %v553, %v552
  %v640 = vpack.c.b16 %v555, %v554
  %v641 = vpack.c.b16 %v557, %v556
  %v642 = vpack.c.b16 %v559, %v558
  %v643 = vpack.c.b16 %v561, %v560
  %v644 = vpack.c.b16 %v563, %v562
  %v645 = vpack.c.b16 %v565, %v564
  %v646 = vpack.c.b16 %v567, %v566
  %v647 = vpack.c.b16 %v569, %v568
  %v648 = vpack.c.b16 %v571, %v570
  %v649 = vpack.c.b16 %v573, %v572
  %v650 = vpack.c.b16 %v575, %v574
  %v651 = vpack.c.b16 %v577, %v576
  %v652 = vpack.c.b16 %v579, %v578
  %v653 = vpack.c.b16 %v581, %v580
  %v654 = vpack.c.b16 %v583, %v582
  %v655 = vpack.c.b16 %v585, %v584
  %v656 = vpack.c.b16 %v587, %v586
  %v657 = vpack.c.b16 %v589, %v588
  %v658 = vpack.c.b16 %v591, %v590
  %v659 = vpack.c.b16 %v593, %v592
  %v660 = vpack.c.b16 %v595, %v594
  %v661 = vpack.c.b16 %v597, %v596
  %726 = vmatprep.subr.bf16.mxu0 0
  %727 = vmatpush1.bf16.msra.mxu0 %v598
  %728 = vmatprep.subr.bf16.mxu0 0
  %729 = vmatpush1.bf16.msra.mxu0 %v599
  %730 = vmatprep.subr.bf16.mxu0 0
  %731 = vmatpush1.bf16.msra.mxu0 %v600
  %732 = vmatprep.subr.bf16.mxu0 0
  %733 = vmatpush1.bf16.msra.mxu0 %v601
  %734 = vmatprep.subr.bf16.mxu0 0
  %735 = vmatpush1.bf16.msra.mxu0 %v602
  %736 = vmatprep.subr.bf16.mxu0 0
  %737 = vmatpush1.bf16.msra.mxu0 %v603
  %738 = vmatprep.subr.bf16.mxu0 0
  %739 = vmatpush1.bf16.msra.mxu0 %v604
  %740 = vmatprep.subr.bf16.mxu0 0
  %741 = vmatpush1.bf16.msra.mxu0 %v605
  %742 = vmatprep.subr.bf16.mxu0 0
  %743 = vmatpush1.bf16.msra.mxu0 %v606
  %744 = vmatprep.subr.bf16.mxu0 0
  %745 = vmatpush1.bf16.msra.mxu0 %v607
  %746 = vmatprep.subr.bf16.mxu0 0
  %747 = vmatpush1.bf16.msra.mxu0 %v608
  %748 = vmatprep.subr.bf16.mxu0 0
  %749 = vmatpush1.bf16.msra.mxu0 %v609
  %750 = vmatprep.subr.bf16.mxu0 0
  %751 = vmatpush1.bf16.msra.mxu0 %v610
  %752 = vmatprep.subr.bf16.mxu0 0
  %753 = vmatpush1.bf16.msra.mxu0 %v611
  %754 = vmatprep.subr.bf16.mxu0 0
  %755 = vmatpush1.bf16.msra.mxu0 %v612
  %756 = vmatprep.subr.bf16.mxu0 0
  %757 = vmatpush1.bf16.msra.mxu0 %v613
  %758 = vmatprep.mubr.bf16.mxu0 %v279
  %759 = vmatmul.mubr.bf16.gmra.mrb[0].mxu0 %v278
  %v760 = vpop.f32.mrb[0].mxu0
  %v761 = vadd.f32 %v180, %v760
  %v762 = vpop.f32.mrb[0].mxu0
  %v763 = vpop.f32.mrb[0].mxu0
  %v764 = vadd.f32 %v180, %v763
  %v765 = vpop.f32.mrb[0].mxu0
  %766 = vmatprep.mubr.bf16.mxu0 %v287
  %767 = vmatmul.mubr.bf16.gmra.mrb[0].mxu0 %v286
  %v768 = vpop.f32.mrb[0].mxu0
  %v769 = vadd.f32 %v180, %v768
  %v770 = vpop.f32.mrb[0].mxu0
  %v771 = vpop.f32.mrb[0].mxu0
  %v772 = vadd.f32 %v180, %v771
  %v773 = vpop.f32.mrb[0].mxu0
  %774 = vmatprep.mubr.bf16.mxu0 %v295
  %775 = vmatmul.mubr.bf16.gmra.mrb[0].mxu0 %v294
  %v776 = vpop.f32.mrb[0].mxu0
  %v777 = vadd.f32 %v180, %v776
  %v778 = vpop.f32.mrb[0].mxu0
  %v779 = vpop.f32.mrb[0].mxu0
  %v780 = vadd.f32 %v180, %v779
  %v781 = vpop.f32.mrb[0].mxu0
  %782 = vmatprep.mubr.bf16.mxu0 %v303
  %783 = vmatmul.mubr.bf16.gmra.mrb[0].mxu0 %v302
  %v784 = vpop.f32.mrb[0].mxu0
  %v785 = vadd.f32 %v180, %v784
  %v786 = vpop.f32.mrb[0].mxu0
  %v787 = vpop.f32.mrb[0].mxu0
  %v788 = vadd.f32 %v180, %v787
  %v789 = vpop.f32.mrb[0].mxu0
  %790 = vdwg.mxu0
  %791 = vmatprep.subr.bf16.mxu0 0
  %792 = vmatpush1.bf16.msra.mxu0 %v614
  %793 = vmatprep.subr.bf16.mxu0 0
  %794 = vmatpush1.bf16.msra.mxu0 %v615
  %795 = vmatprep.subr.bf16.mxu0 0
  %796 = vmatpush1.bf16.msra.mxu0 %v616
  %797 = vmatprep.subr.bf16.mxu0 0
  %798 = vmatpush1.bf16.msra.mxu0 %v617
  %799 = vmatprep.subr.bf16.mxu0 0
  %800 = vmatpush1.bf16.msra.mxu0 %v618
  %801 = vmatprep.subr.bf16.mxu0 0
  %802 = vmatpush1.bf16.msra.mxu0 %v619
  %803 = vmatprep.subr.bf16.mxu0 0
  %804 = vmatpush1.bf16.msra.mxu0 %v620
  %805 = vmatprep.subr.bf16.mxu0 0
  %806 = vmatpush1.bf16.msra.mxu0 %v621
  %807 = vmatprep.subr.bf16.mxu0 0
  %808 = vmatpush1.bf16.msra.mxu0 %v622
  %809 = vmatprep.subr.bf16.mxu0 0
  %810 = vmatpush1.bf16.msra.mxu0 %v623
  %811 = vmatprep.subr.bf16.mxu0 0
  %812 = vmatpush1.bf16.msra.mxu0 %v624
  %813 = vmatprep.subr.bf16.mxu0 0
  %814 = vmatpush1.bf16.msra.mxu0 %v625
  %815 = vmatprep.subr.bf16.mxu0 0
  %816 = vmatpush1.bf16.msra.mxu0 %v626
  %817 = vmatprep.subr.bf16.mxu0 0
  %818 = vmatpush1.bf16.msra.mxu0 %v627
  %819 = vmatprep.subr.bf16.mxu0 0
  %820 = vmatpush1.bf16.msra.mxu0 %v628
  %821 = vmatprep.subr.bf16.mxu0 0
  %822 = vmatpush1.bf16.msra.mxu0 %v629
  %823 = vmatprep.mubr.bf16.mxu0 %v281
  %824 = vmatmul.mubr.bf16.gmra.mrb[0].mxu0 %v280
  %v825 = vpop.f32.mrb[0].mxu0
  %v826 = vadd.f32 %v761, %v825
  %v827 = vpop.f32.mrb[0].mxu0
  %v828 = vpop.f32.mrb[0].mxu0
  %v829 = vadd.f32 %v764, %v828
  %v830 = vpop.f32.mrb[0].mxu0
  %831 = vmatprep.mubr.bf16.mxu0 %v289
  %832 = vmatmul.mubr.bf16.gmra.mrb[0].mxu0 %v288
  %v833 = vpop.f32.mrb[0].mxu0
  %v834 = vadd.f32 %v769, %v833
  %v835 = vpop.f32.mrb[0].mxu0
  %v836 = vpop.f32.mrb[0].mxu0
  %v837 = vadd.f32 %v772, %v836
  %v838 = vpop.f32.mrb[0].mxu0
  %839 = vmatprep.mubr.bf16.mxu0 %v297
  %840 = vmatmul.mubr.bf16.gmra.mrb[0].mxu0 %v296
  %v841 = vpop.f32.mrb[0].mxu0
  %v842 = vadd.f32 %v777, %v841
  %v843 = vpop.f32.mrb[0].mxu0
  %v844 = vpop.f32.mrb[0].mxu0
  %v845 = vadd.f32 %v780, %v844
  %v846 = vpop.f32.mrb[0].mxu0
  %847 = vmatprep.mubr.bf16.mxu0 %v305
  %848 = vmatmul.mubr.bf16.gmra.mrb[0].mxu0 %v304
  %v849 = vpop.f32.mrb[0].mxu0
  %v850 = vadd.f32 %v785, %v849
  %v851 = vpop.f32.mrb[0].mxu0
  %v852 = vpop.f32.mrb[0].mxu0
  %v853 = vadd.f32 %v788, %v852
  %v854 = vpop.f32.mrb[0].mxu0
  %855 = vdwg.mxu0
  %856 = vmatprep.subr.bf16.mxu0 0
  %857 = vmatpush1.bf16.msra.mxu0 %v630
  %858 = vmatprep.subr.bf16.mxu0 0
  %859 = vmatpush1.bf16.msra.mxu0 %v631
  %860 = vmatprep.subr.bf16.mxu0 0
  %861 = vmatpush1.bf16.msra.mxu0 %v632
  %862 = vmatprep.subr.bf16.mxu0 0
  %863 = vmatpush1.bf16.msra.mxu0 %v633
  %864 = vmatprep.subr.bf16.mxu0 0
  %865 = vmatpush1.bf16.msra.mxu0 %v634
  %866 = vmatprep.subr.bf16.mxu0 0
  %867 = vmatpush1.bf16.msra.mxu0 %v635
  %868 = vmatprep.subr.bf16.mxu0 0
  %869 = vmatpush1.bf16.msra.mxu0 %v636
  %870 = vmatprep.subr.bf16.mxu0 0
  %871 = vmatpush1.bf16.msra.mxu0 %v637
  %872 = vmatprep.subr.bf16.mxu0 0
  %873 = vmatpush1.bf16.msra.mxu0 %v638
  %874 = vmatprep.subr.bf16.mxu0 0
  %875 = vmatpush1.bf16.msra.mxu0 %v639
  %876 = vmatprep.subr.bf16.mxu0 0
  %877 = vmatpush1.bf16.msra.mxu0 %v640
  %878 = vmatprep.subr.bf16.mxu0 0
  %879 = vmatpush1.bf16.msra.mxu0 %v641
  %880 = vmatprep.subr.bf16.mxu0 0
  %881 = vmatpush1.bf16.msra.mxu0 %v642
  %882 = vmatprep.subr.bf16.mxu0 0
  %883 = vmatpush1.bf16.msra.mxu0 %v643
  %884 = vmatprep.subr.bf16.mxu0 0
  %885 = vmatpush1.bf16.msra.mxu0 %v644
  %886 = vmatprep.subr.bf16.mxu0 0
  %887 = vmatpush1.bf16.msra.mxu0 %v645
  %888 = vmatprep.mubr.bf16.mxu0 %v283
  %889 = vmatmul.mubr.bf16.gmra.mrb[0].mxu0 %v282
  %v890 = vpop.f32.mrb[0].mxu0
  %v891 = vadd.f32 %v826, %v890
  %v892 = vpop.f32.mrb[0].mxu0
  %v893 = vpop.f32.mrb[0].mxu0
  %v894 = vadd.f32 %v829, %v893
  %v895 = vpop.f32.mrb[0].mxu0
  %896 = vmatprep.mubr.bf16.mxu0 %v291
  %897 = vmatmul.mubr.bf16.gmra.mrb[0].mxu0 %v290
  %v898 = vpop.f32.mrb[0].mxu0
  %v899 = vadd.f32 %v834, %v898
  %v900 = vpop.f32.mrb[0].mxu0
  %v901 = vpop.f32.mrb[0].mxu0
  %v902 = vadd.f32 %v837, %v901
  %v903 = vpop.f32.mrb[0].mxu0
  %904 = vmatprep.mubr.bf16.mxu0 %v299
  %905 = vmatmul.mubr.bf16.gmra.mrb[0].mxu0 %v298
  %v906 = vpop.f32.mrb[0].mxu0
  %v907 = vadd.f32 %v842, %v906
  %v908 = vpop.f32.mrb[0].mxu0
  %v909 = vpop.f32.mrb[0].mxu0
  %v910 = vadd.f32 %v845, %v909
  %v911 = vpop.f32.mrb[0].mxu0
  %912 = vmatprep.mubr.bf16.mxu0 %v307
  %913 = vmatmul.mubr.bf16.gmra.mrb[0].mxu0 %v306
  %v914 = vpop.f32.mrb[0].mxu0
  %v915 = vadd.f32 %v850, %v914
  %v916 = vpop.f32.mrb[0].mxu0
  %v917 = vpop.f32.mrb[0].mxu0
  %v918 = vadd.f32 %v853, %v917
  %v919 = vpop.f32.mrb[0].mxu0
  %920 = vdwg.mxu0
  %921 = vmatprep.subr.bf16.mxu0 0
  %922 = vmatpush1.bf16.msra.mxu0 %v646
  %923 = vmatprep.subr.bf16.mxu0 0
  %924 = vmatpush1.bf16.msra.mxu0 %v647
  %925 = vmatprep.subr.bf16.mxu0 0
  %926 = vmatpush1.bf16.msra.mxu0 %v648
  %927 = vmatprep.subr.bf16.mxu0 0
  %928 = vmatpush1.bf16.msra.mxu0 %v649
  %929 = vmatprep.subr.bf16.mxu0 0
  %930 = vmatpush1.bf16.msra.mxu0 %v650
  %931 = vmatprep.subr.bf16.mxu0 0
  %932 = vmatpush1.bf16.msra.mxu0 %v651
  %933 = vmatprep.subr.bf16.mxu0 0
  %934 = vmatpush1.bf16.msra.mxu0 %v652
  %935 = vmatprep.subr.bf16.mxu0 0
  %936 = vmatpush1.bf16.msra.mxu0 %v653
  %937 = vmatprep.subr.bf16.mxu0 0
  %938 = vmatpush1.bf16.msra.mxu0 %v654
  %939 = vmatprep.subr.bf16.mxu0 0
  %940 = vmatpush1.bf16.msra.mxu0 %v655
  %941 = vmatprep.subr.bf16.mxu0 0
  %942 = vmatpush1.bf16.msra.mxu0 %v656
  %943 = vmatprep.subr.bf16.mxu0 0
  %944 = vmatpush1.bf16.msra.mxu0 %v657
  %945 = vmatprep.subr.bf16.mxu0 0
  %946 = vmatpush1.bf16.msra.mxu0 %v658
  %947 = vmatprep.subr.bf16.mxu0 0
  %948 = vmatpush1.bf16.msra.mxu0 %v659
  %949 = vmatprep.subr.bf16.mxu0 0
  %950 = vmatpush1.bf16.msra.mxu0 %v660
  %951 = vmatprep.subr.bf16.mxu0 0
  %952 = vmatpush1.bf16.msra.mxu0 %v661
  %953 = vmatprep.mubr.bf16.mxu0 %v285
  %954 = vmatmul.mubr.bf16.gmra.mrb[0].mxu0 %v284
  %v955 = vpop.f32.mrb[0].mxu0
  %v956 = vadd.f32 %v891, %v955
  %v957 = vpop.f32.mrb[0].mxu0
  %v958 = vpop.f32.mrb[0].mxu0
  %v959 = vadd.f32 %v894, %v958
  %v960 = vpop.f32.mrb[0].mxu0
  %961 = vmatprep.mubr.bf16.mxu0 %v293
  %962 = vmatmul.mubr.bf16.gmra.mrb[0].mxu0 %v292
  %v963 = vpop.f32.mrb[0].mxu0
  %v964 = vadd.f32 %v899, %v963
  %v965 = vpop.f32.mrb[0].mxu0
  %v966 = vpop.f32.mrb[0].mxu0
  %v967 = vadd.f32 %v902, %v966
  %v968 = vpop.f32.mrb[0].mxu0
  %969 = vmatprep.mubr.bf16.mxu0 %v301
  %970 = vmatmul.mubr.bf16.gmra.mrb[0].mxu0 %v300
  %v971 = vpop.f32.mrb[0].mxu0
  %v972 = vadd.f32 %v907, %v971
  %v973 = vpop.f32.mrb[0].mxu0
  %v974 = vpop.f32.mrb[0].mxu0
  %v975 = vadd.f32 %v910, %v974
  %v976 = vpop.f32.mrb[0].mxu0
  %977 = vmatprep.mubr.bf16.mxu0 %v309
  %978 = vmatmul.mubr.bf16.gmra.mrb[0].mxu0 %v308
  %v979 = vpop.f32.mrb[0].mxu0
  %v980 = vadd.f32 %v915, %v979
  %v981 = vpop.f32.mrb[0].mxu0
  %v982 = vpop.f32.mrb[0].mxu0
  %v983 = vadd.f32 %v918, %v982
  %v984 = vpop.f32.mrb[0].mxu0
  %985 = vdwg.mxu0
  %986 = vst [vmem:[%s3] sm:$0xff] %v956
  %987 = vst [vmem:[%s3 + $0x8] sm:$0xff] %v959
  %988 = vst [vmem:[%s3 + $0x10] sm:$0xff] %v964
  %989 = vst [vmem:[%s3 + $0x18] sm:$0xff] %v967
  %990 = vst [vmem:[%s3 + $0x20] sm:$0xff] %v972
  %991 = vst [vmem:[%s3 + $0x28] sm:$0xff] %v975
  %992 = vst [vmem:[%s3 + $0x30] sm:$0xff] %v980
  %993 = vst [vmem:[%s3 + $0x38] sm:$0xff] %v983
  // Predicated region
  $region14: #{_lambda_.9} parent=0 // pred_check
    _
  $region15: #{_lambda_.9} parent=0 // pred_check_branch
    %995 = sbr.rel (0) target = $region17
  $region16: #{_lambda_.9} parent=0 // pred_region
    _
  $region17: #{_lambda_.9} parent=0 // pred_fallthru
    _
  // Predicated region
  $region18: #{_lambda_.9} parent=0 // pred_check
    _
  $region19: #{_lambda_.9} parent=0 // pred_check_branch
    %997 = sbr.rel (0) target = $region21
  $region20: #{_lambda_.9} parent=0 // pred_region
    _
  $region21: #{_lambda_.9} parent=0 // pred_fallthru
    _

</llo_original>
